<compile_context>
chip_gen: v5e
topology: v5e:2x2
jax: 0.10.0
libtpu: 0.0.40
codegen_flags: <defaults>
</compile_context>

<pallas_src>
import functools

import jax
import jax.numpy as jnp
from jax.experimental import pallas as pl
from jax.experimental.pallas import tpu as pltpu

LANE = 128
MAX_TILE = 1024  # sweep 512 / 1024 / 2048 (2048 needs a vmem_limit bump on v5e)


def _round_up(x, m):
    return ((x + m - 1) // m) * m


def _pick_tile(n):
    """Row/col aggregation tile; always divides the padded node count."""
    t = min(MAX_TILE, _round_up(n, 256))
    return t, _round_up(n, t)


# ------------------------------ Pallas kernels ------------------------------ #
def xw_scale_kernel(x_ref, w_ref, dinv_ref, z_ref):
    # Z row-tile = dinv * (X row-tile @ W); bf16 MXU inputs, f32 accumulate.
    z = jnp.dot(x_ref[...], w_ref[...], preferred_element_type=jnp.float32)
    z_ref[...] = (dinv_ref[...] * z).astype(z_ref.dtype)


def agg_fuse_kernel(a_ref, z1_ref, dinv_ref, b1_ref, w2_ref, o_ref, acc_ref):
    # acc = sum_k (A+I)[i_tile, k_tile] @ Z1[k_tile]       (f32 accumulation)
    # epilogue: H = relu(dinv*acc + b1); out = dinv * (H_bf16 @ W2)
    k = pl.program_id(1)

    @pl.when(k == 0)
    def _():
        acc_ref[...] = jnp.zeros_like(acc_ref)

    # int8 -> bf16 upcast (via f32) on the VPU; free while the kernel is DMA-bound.
    a = a_ref[...].astype(jnp.float32).astype(jnp.bfloat16)
    acc_ref[...] += jnp.dot(a, z1_ref[...], preferred_element_type=jnp.float32)

    @pl.when(k == pl.num_programs(1) - 1)
    def _():
        dinv = dinv_ref[...]
        h = jnp.maximum(dinv * acc_ref[...] + b1_ref[...], 0.0)      # f32 (tm, h)
        z2 = jnp.dot(h.astype(jnp.bfloat16), w2_ref[...],
                     preferred_element_type=jnp.float32)             # f32 (tm, c)
        o_ref[...] = (dinv * z2).astype(o_ref.dtype)                 # pre-scaled Z2


def agg_final_kernel(a_ref, z2_ref, dinv_ref, b2_ref, o_ref):
    # Out = dinv * sum_k (A+I)[i_tile, k_tile] @ Z2s[k_tile] + b2
    # f32 accumulation directly in the resident output block (no scratch).
    k = pl.program_id(1)

    @pl.when(k == 0)
    def _():
        o_ref[...] = jnp.zeros_like(o_ref)

    a = a_ref[...].astype(jnp.float32).astype(jnp.bfloat16)
    o_ref[...] += jnp.dot(a, z2_ref[...], preferred_element_type=jnp.float32)

    @pl.when(k == pl.num_programs(1) - 1)
    def _():
        o_ref[...] = dinv_ref[...] * o_ref[...] + b2_ref[...]


# ------------------------------ pallas_call wrappers ------------------------ #
def xw_matmul_scaled(x_bf16, w_bf16, dinv, *, tm):
    """Z = dinv * (X @ W).  x: (N_pad, F_in_p) bf16 -> (N_pad, F_out_p) bf16."""
    n_pad, f_in = x_bf16.shape
    f_out = w_bf16.shape[1]
    return pl.pallas_call(
        xw_scale_kernel,
        out_shape=jax.ShapeDtypeStruct((n_pad, f_out), jnp.bfloat16),
        grid=(n_pad // tm,),
        in_specs=[
            pl.BlockSpec((tm, f_in), lambda i: (i, 0)),
            pl.BlockSpec((f_in, f_out), lambda i: (0, 0)),
            pl.BlockSpec((tm, 1), lambda i: (i, 0)),
        ],
        out_specs=pl.BlockSpec((tm, f_out), lambda i: (i, 0)),
        compiler_params=pltpu.CompilerParams(dimension_semantics=("parallel",)),
    )(x_bf16, w_bf16, dinv)


def aggregate_fused(a_i8, z1, dinv, b1, w2_bf16, *, tm, tk):
    """Z2s = dinv * (relu(dinv * ((A+I) @ Z1) + b1) @ W2), bf16 output."""
    n_pad = a_i8.shape[0]
    h_p = z1.shape[1]
    c_p = w2_bf16.shape[1]
    cost = pl.CostEstimate(
        flops=2 * n_pad * n_pad * h_p + 2 * n_pad * h_p * c_p,
        transcendentals=0,
        bytes_accessed=(n_pad * n_pad                      # int8 A stream
                        + (n_pad // tm) * n_pad * h_p * 2  # Z1 re-reads (bf16)
                        + n_pad * c_p * 2),                # Z2s writeback (bf16)
    )
    return pl.pallas_call(
        agg_fuse_kernel,
        out_shape=jax.ShapeDtypeStruct((n_pad, c_p), jnp.bfloat16),
        grid=(n_pad // tm, n_pad // tk),
        in_specs=[
            pl.BlockSpec((tm, tk), lambda i, k: (i, k)),     # (A+I) int8 tile
            pl.BlockSpec((tk, h_p), lambda i, k: (k, 0)),    # Z1 k-slab (bf16)
            pl.BlockSpec((tm, 1), lambda i, k: (i, 0)),      # dinv row tile (f32)
            pl.BlockSpec((1, h_p), lambda i, k: (0, 0)),     # b1
            pl.BlockSpec((h_p, c_p), lambda i, k: (0, 0)),   # W2 (resident, bf16)
        ],
        out_specs=pl.BlockSpec((tm, c_p), lambda i, k: (i, 0)),
        scratch_shapes=[pltpu.VMEM((tm, h_p), jnp.float32)],
        compiler_params=pltpu.CompilerParams(
            dimension_semantics=("parallel", "arbitrary")),
        cost_estimate=cost,
    )(a_i8, z1, dinv, b1.reshape(1, h_p), w2_bf16)


def aggregate_final(a_i8, z2, dinv, b2, *, tm, tk):
    """Out = dinv * ((A+I) @ Z2s) + b2, f32 output accumulated in place."""
    n_pad = a_i8.shape[0]
    c_p = z2.shape[1]
    cost = pl.CostEstimate(
        flops=2 * n_pad * n_pad * c_p,
        transcendentals=0,
        bytes_accessed=(n_pad * n_pad
                        + (n_pad // tm) * n_pad * c_p * 2
                        + n_pad * c_p * 4),
    )
    return pl.pallas_call(
        agg_final_kernel,
        out_shape=jax.ShapeDtypeStruct((n_pad, c_p), jnp.float32),
        grid=(n_pad // tm, n_pad // tk),
        in_specs=[
            pl.BlockSpec((tm, tk), lambda i, k: (i, k)),
            pl.BlockSpec((tk, c_p), lambda i, k: (k, 0)),
            pl.BlockSpec((tm, 1), lambda i, k: (i, 0)),
            pl.BlockSpec((1, c_p), lambda i, k: (0, 0)),
        ],
        out_specs=pl.BlockSpec((tm, c_p), lambda i, k: (i, 0)),
        compiler_params=pltpu.CompilerParams(
            dimension_semantics=("parallel", "arbitrary")),
        cost_estimate=cost,
    )(a_i8, z2, dinv, b2.reshape(1, c_p))


# --------------------------------- glue (JAX) ------------------------------- #
def build_graph(edge_index, num_nodes):
    """(A + I) with summed duplicate edges (PyG semantics) and D^{-1/2}."""
    src, dst = edge_index[0], edge_index[1]
    a = jnp.zeros((num_nodes, num_nodes), dtype=jnp.float32)
    a = a.at[dst, src].add(1.0)                    # messages flow src -> dst
    a = a + jnp.eye(num_nodes, dtype=jnp.float32)  # add self loops
    deg = jnp.sum(a, axis=1)
    dinv_sqrt = jnp.where(deg > 0, jax.lax.rsqrt(deg), 0.0)
    return a, dinv_sqrt


def glorot(key, fan_in, fan_out):
    limit = jnp.sqrt(6.0 / (fan_in + fan_out))
    return jax.random.uniform(
        key, (fan_in, fan_out), dtype=jnp.float32, minval=-limit, maxval=limit)


def gcn_forward(x, a_plus_i, dinv_sqrt, params):
    """2-layer GCN forward. x: (N, F_in) f32, a_plus_i: (N, N) f32 counts."""
    n, f_in = x.shape
    h_feats = params["w1"].shape[1]
    num_classes = params["w2"].shape[1]

    tm, n_pad = _pick_tile(n)
    tk = tm
    f_in_p = _round_up(f_in, LANE)
    h_p = _round_up(h_feats, LANE)
    c_p = _round_up(num_classes, LANE)

    # Zero padding is exact: padded rows/cols of (A+I) are zero AND dinv of padded
    # nodes is zero, so the bias added to padded rows in the layer-1 epilogue is
    # annihilated (dinv=0) before it can reach layer 2.
    x_bf = (jnp.zeros((n_pad, f_in_p), jnp.float32)
            .at[:n, :f_in].set(x)).astype(jnp.bfloat16)
    # (A + I) entries are small non-negative integer edge counts -> exact in int8.
    # TODO(synk): guard/clip if a multigraph ever has >127 parallel edges.
    a_i8 = (jnp.zeros((n_pad, n_pad), jnp.float32)
            .at[:n, :n].set(a_plus_i)).astype(jnp.int8)
    dinv = jnp.zeros((n_pad, 1), jnp.float32).at[:n, 0].set(dinv_sqrt)

    w1 = (jnp.zeros((f_in_p, h_p), jnp.float32)
          .at[:f_in, :h_feats].set(params["w1"])).astype(jnp.bfloat16)
    b1 = jnp.zeros((h_p,), jnp.float32).at[:h_feats].set(params["b1"])
    w2 = (jnp.zeros((h_p, c_p), jnp.float32)
          .at[:h_feats, :num_classes].set(params["w2"])).astype(jnp.bfloat16)
    b2 = jnp.zeros((c_p,), jnp.float32).at[:num_classes].set(params["b2"])

    z1 = xw_matmul_scaled(x_bf, w1, dinv, tm=tm)               # dinv * (X W1)
    z2 = aggregate_fused(a_i8, z1, dinv, b1, w2, tm=tm, tk=tk)  # dinv * (H W2)
    out = aggregate_final(a_i8, z2, dinv, b2, tm=tm, tk=tk)     # layer-2 aggregate

    return out[:n, :num_classes]


def gcn_reference(x, a_plus_i, dinv_sqrt, params):
    a_hat = dinv_sqrt[:, None] * a_plus_i * dinv_sqrt[None, :]
    h = jnp.maximum(a_hat @ (x @ params["w1"]) + params["b1"], 0.0)
    return a_hat @ (h @ params["w2"]) + params["b2"]


if __name__ == "__main__":
    # Small synthetic graph consistent with the module's forward.
    num_nodes = 64
    num_edges = 256
    in_feats = 16
    h_feats = 32
    num_classes = 8

    key = jax.random.PRNGKey(0)
    k_x, k_e0, k_e1, k_w1, k_w2 = jax.random.split(key, 5)

    x = jax.random.normal(k_x, (num_nodes, in_feats), dtype=jnp.float32)
    edge_index = jnp.stack([
        jax.random.randint(k_e0, (num_edges,), 0, num_nodes),
        jax.random.randint(k_e1, (num_edges,), 0, num_nodes),
    ]).astype(jnp.int32)

    # Deterministic parameter init (shapes per GCNConv(in, out)): glorot W, zero b.
    params = {
        "w1": glorot(k_w1, in_feats, h_feats),
        "b1": jnp.zeros((h_feats,), dtype=jnp.float32),
        "w2": glorot(k_w2, h_feats, num_classes),
        "b2": jnp.zeros((num_classes,), dtype=jnp.float32),
    }

    a_plus_i, dinv_sqrt = build_graph(edge_index, num_nodes)

    out = jax.jit(gcn_forward)(x, a_plus_i, dinv_sqrt, params)
    jax.block_until_ready(out)
    assert out.shape == (num_nodes, num_classes)

    # Check vs the f32 reference.  D^{-1/2} and the adjacency are exact in the
    # kernel path; remaining error is bf16 rounding of X / W / Z (<~2% rel).
    ref = gcn_reference(x, a_plus_i, dinv_sqrt, params)
    err = float(jnp.max(jnp.abs(out - ref)))
    assert err < 5e-2, f"max abs error vs f32 reference too large: {err}"
    print("KERNEL_OK")
</pallas_src>

<mosaic_0001>
module attributes {stable_mosaic.version = 11 : i64} {
  func.func @xw_scale_kernel(%arg0: i32, %arg1: memref<256x128xbf16, #tpu.memory_space<vmem>>, %arg2: memref<128x128xbf16, #tpu.memory_space<vmem>>, %arg3: memref<256x1xf32, #tpu.memory_space<vmem>>, %arg4: memref<256x128xbf16, #tpu.memory_space<vmem>>) attributes {dimension_semantics = [#tpu.dimension_semantics<parallel>], iteration_bounds = array<i64: 1>, scalar_prefetch = 0 : i64, scratch_operands = 0 : i64, tpu.core_type = #tpu.core_type<tc>, window_params = [{transform_indices = @transform_0, window_bounds = array<i64: 256, 128>}, {pipeline_mode = #tpu.pipeline_mode<synchronous>, transform_indices = @transform_1, window_bounds = array<i64: 128, 128>}, {transform_indices = @transform_2, window_bounds = array<i64: 256, 1>}, {transform_indices = @transform_3, window_bounds = array<i64: 256, 128>}]} {
    %c0 = arith.constant 0 : index
    %c0_0 = arith.constant 0 : index
    %0 = vector.load %arg1[%c0, %c0_0] : memref<256x128xbf16, #tpu.memory_space<vmem>>, vector<256x128xbf16>
    %c0_1 = arith.constant 0 : index
    %c0_2 = arith.constant 0 : index
    %1 = vector.load %arg2[%c0_1, %c0_2] : memref<128x128xbf16, #tpu.memory_space<vmem>>, vector<128x128xbf16>
    %cst = arith.constant dense<0.000000e+00> : vector<256x128xf32>
    %2 = tpu.matmul %0, %1, %cst {dimension_numbers = #tpu.dot_dimension_numbers<[1], [0], [0], [1], [0, 0, 1, 1], [], []>} : vector<256x128xbf16>, vector<128x128xbf16>, vector<256x128xf32> -> vector<256x128xf32>
    %c0_3 = arith.constant 0 : index
    %c0_4 = arith.constant 0 : index
    %3 = vector.load %arg3[%c0_3, %c0_4] : memref<256x1xf32, #tpu.memory_space<vmem>>, vector<256x1xf32>
    %4 = vector.broadcast %3 : vector<256x1xf32> to vector<256x128xf32>
    %5 = arith.mulf %4, %2 : vector<256x128xf32>
    %6 = arith.truncf %5 : vector<256x128xf32> to vector<256x128xbf16>
    %c0_5 = arith.constant 0 : index
    %c0_6 = arith.constant 0 : index
    %7 = vector.load %arg4[%c0_5, %c0_6] : memref<256x128xbf16, #tpu.memory_space<vmem>>, vector<256x128xbf16>
    tpu.vector_store %arg4[%c0_5, %c0_6], %6 {strides = array<i32>} : memref<256x128xbf16, #tpu.memory_space<vmem>>, vector<256x128xbf16>,
    return
  }
  func.func @transform_0(%arg0: i32) -> (i32, i32) {
    %c0_i32 = arith.constant 0 : i32
    %c0_i32_0 = arith.constant 0 : i32
    return %arg0, %c0_i32 : i32, i32
  }
  func.func @transform_1(%arg0: i32) -> (i32, i32) {
    %c0_i32 = arith.constant 0 : i32
    %c0_i32_0 = arith.constant 0 : i32
    %c0_i32_1 = arith.constant 0 : i32
    return %c0_i32, %c0_i32_0 : i32, i32
  }
  func.func @transform_2(%arg0: i32) -> (i32, i32) {
    %c0_i32 = arith.constant 0 : i32
    %c0_i32_0 = arith.constant 0 : i32
    return %arg0, %c0_i32 : i32, i32
  }
  func.func @transform_3(%arg0: i32) -> (i32, i32) {
    %c0_i32 = arith.constant 0 : i32
    %c0_i32_0 = arith.constant 0 : i32
    return %arg0, %c0_i32 : i32, i32
  }
}

module attributes {stable_mosaic.version = 11 : i64} {
  func.func @agg_fuse_kernel(%arg0: i32, %arg1: i32, %arg2: memref<256x256xi8, #tpu.memory_space<vmem>>, %arg3: memref<256x128xbf16, #tpu.memory_space<vmem>>, %arg4: memref<256x1xf32, #tpu.memory_space<vmem>>, %arg5: memref<1x128xf32, #tpu.memory_space<vmem>>, %arg6: memref<128x128xbf16, #tpu.memory_space<vmem>>, %arg7: memref<256x128xbf16, #tpu.memory_space<vmem>>, %arg8: memref<256x128xf32, #tpu.memory_space<vmem>>) attributes {dimension_semantics = [#tpu.dimension_semantics<parallel>, #tpu.dimension_semantics<arbitrary>], iteration_bounds = array<i64: 1, 1>, scalar_prefetch = 0 : i64, scratch_operands = 1 : i64, tpu.core_type = #tpu.core_type<tc>, window_params = [{transform_indices = @transform_0, window_bounds = array<i64: 256, 256>}, {transform_indices = @transform_1, window_bounds = array<i64: 256, 128>}, {transform_indices = @transform_2, window_bounds = array<i64: 256, 1>}, {pipeline_mode = #tpu.pipeline_mode<synchronous>, transform_indices = @transform_3, window_bounds = array<i64: 1, 128>}, {pipeline_mode = #tpu.pipeline_mode<synchronous>, transform_indices = @transform_4, window_bounds = array<i64: 128, 128>}, {transform_indices = @transform_5, window_bounds = array<i64: 256, 128>}]} {
    %c0_i32 = arith.constant 0 : i32
    %0 = arith.cmpi eq, %arg1, %c0_i32 : i32
    %1 = arith.extui %0 : i1 to i32
    %c0_i32_0 = arith.constant 0 : i32
    %2 = arith.cmpi ne, %1, %c0_i32_0 : i32
    scf.if %2 {
      %cst_10 = arith.constant 0.000000e+00 : f32
      %14 = vector.broadcast %cst_10 : f32 to vector<256x128xf32>
      %c0_11 = arith.constant 0 : index
      %c0_12 = arith.constant 0 : index
      %15 = vector.load %arg8[%c0_11, %c0_12] : memref<256x128xf32, #tpu.memory_space<vmem>>, vector<256x128xf32>
      tpu.vector_store %arg8[%c0_11, %c0_12], %14 {strides = array<i32>} : memref<256x128xf32, #tpu.memory_space<vmem>>, vector<256x128xf32>,
    } else {
    }
    %c0 = arith.constant 0 : index
    %c0_1 = arith.constant 0 : index
    %3 = vector.load %arg2[%c0, %c0_1] : memref<256x256xi8, #tpu.memory_space<vmem>>, vector<256x256xi8>
    %4 = arith.sitofp %3 : vector<256x256xi8> to vector<256x256xf32>
    %5 = arith.truncf %4 : vector<256x256xf32> to vector<256x256xbf16>
    %c0_2 = arith.constant 0 : index
    %c0_3 = arith.constant 0 : index
    %6 = vector.load %arg8[%c0_2, %c0_3] : memref<256x128xf32, #tpu.memory_space<vmem>>, vector<256x128xf32>
    %c0_4 = arith.constant 0 : index
    %c0_5 = arith.constant 0 : index
    %7 = vector.load %arg3[%c0_4, %c0_5] : memref<256x128xbf16, #tpu.memory_space<vmem>>, vector<256x128xbf16>
    %cst = arith.constant dense<0.000000e+00> : vector<256x128xf32>
    %8 = tpu.matmul %5, %7, %cst {dimension_numbers = #tpu.dot_dimension_numbers<[1], [0], [0], [1], [0, 0, 1, 1], [], []>} : vector<256x256xbf16>, vector<256x128xbf16>, vector<256x128xf32> -> vector<256x128xf32>
    %9 = arith.addf %6, %8 : vector<256x128xf32>
    %c0_6 = arith.constant 0 : index
    %c0_7 = arith.constant 0 : index
    %10 = vector.load %arg8[%c0_6, %c0_7] : memref<256x128xf32, #tpu.memory_space<vmem>>, vector<256x128xf32>
    tpu.vector_store %arg8[%c0_6, %c0_7], %9 {strides = array<i32>} : memref<256x128xf32, #tpu.memory_space<vmem>>, vector<256x128xf32>,
    %c0_i32_8 = arith.constant 0 : i32
    %11 = arith.cmpi eq, %arg1, %c0_i32_8 : i32
    %12 = arith.extui %11 : i1 to i32
    %c0_i32_9 = arith.constant 0 : i32
    %13 = arith.cmpi ne, %12, %c0_i32_9 : i32
    scf.if %13 {
      %c0_10 = arith.constant 0 : index
      %c0_11 = arith.constant 0 : index
      %14 = vector.load %arg4[%c0_10, %c0_11] : memref<256x1xf32, #tpu.memory_space<vmem>>, vector<256x1xf32>
      %c0_12 = arith.constant 0 : index
      %c0_13 = arith.constant 0 : index
      %15 = vector.load %arg8[%c0_12, %c0_13] : memref<256x128xf32, #tpu.memory_space<vmem>>, vector<256x128xf32>
      %16 = vector.broadcast %14 : vector<256x1xf32> to vector<256x128xf32>
      %17 = arith.mulf %16, %15 : vector<256x128xf32>
      %c0_14 = arith.constant 0 : index
      %c0_15 = arith.constant 0 : index
      %18 = vector.load %arg5[%c0_14, %c0_15] : memref<1x128xf32, #tpu.memory_space<vmem>>, vector<1x128xf32>
      %19 = vector.broadcast %18 : vector<1x128xf32> to vector<256x128xf32>
      %20 = arith.addf %17, %19 : vector<256x128xf32>
      %cst_16 = arith.constant 0.000000e+00 : f32
      %21 = vector.broadcast %cst_16 : f32 to vector<256x128xf32>
      %22 = arith.maximumf %20, %21 : vector<256x128xf32>
      %23 = arith.truncf %22 : vector<256x128xf32> to vector<256x128xbf16>
      %c0_17 = arith.constant 0 : index
      %c0_18 = arith.constant 0 : index
      %24 = vector.load %arg6[%c0_17, %c0_18] : memref<128x128xbf16, #tpu.memory_space<vmem>>, vector<128x128xbf16>
      %cst_19 = arith.constant dense<0.000000e+00> : vector<256x128xf32>
      %25 = tpu.matmul %23, %24, %cst_19 {dimension_numbers = #tpu.dot_dimension_numbers<[1], [0], [0], [1], [0, 0, 1, 1], [], []>} : vector<256x128xbf16>, vector<128x128xbf16>, vector<256x128xf32> -> vector<256x128xf32>
      %26 = vector.broadcast %14 : vector<256x1xf32> to vector<256x128xf32>
      %27 = arith.mulf %26, %25 : vector<256x128xf32>
      %28 = arith.truncf %27 : vector<256x128xf32> to vector<256x128xbf16>
      %c0_20 = arith.constant 0 : index
      %c0_21 = arith.constant 0 : index
      %29 = vector.load %arg7[%c0_20, %c0_21] : memref<256x128xbf16, #tpu.memory_space<vmem>>, vector<256x128xbf16>
      tpu.vector_store %arg7[%c0_20, %c0_21], %28 {strides = array<i32>} : memref<256x128xbf16, #tpu.memory_space<vmem>>, vector<256x128xbf16>,
    } else {
    }
    return
  }
  func.func @transform_0(%arg0: i32, %arg1: i32) -> (i32, i32) {
    %c0_i32 = arith.constant 0 : i32
    return %arg0, %arg1 : i32, i32
  }
  func.func @transform_1(%arg0: i32, %arg1: i32) -> (i32, i32) {
    %c0_i32 = arith.constant 0 : i32
    %c0_i32_0 = arith.constant 0 : i32
    return %arg1, %c0_i32 : i32, i32
  }
  func.func @transform_2(%arg0: i32, %arg1: i32) -> (i32, i32) {
    %c0_i32 = arith.constant 0 : i32
    %c0_i32_0 = arith.constant 0 : i32
    return %arg0, %c0_i32 : i32, i32
  }
  func.func @transform_3(%arg0: i32, %arg1: i32) -> (i32, i32) {
    %c0_i32 = arith.constant 0 : i32
    %c0_i32_0 = arith.constant 0 : i32
    %c0_i32_1 = arith.constant 0 : i32
    return %c0_i32, %c0_i32_0 : i32, i32
  }
  func.func @transform_4(%arg0: i32, %arg1: i32) -> (i32, i32) {
    %c0_i32 = arith.constant 0 : i32
    %c0_i32_0 = arith.constant 0 : i32
    %c0_i32_1 = arith.constant 0 : i32
    return %c0_i32, %c0_i32_0 : i32, i32
  }
  func.func @transform_5(%arg0: i32, %arg1: i32) -> (i32, i32) {
    %c0_i32 = arith.constant 0 : i32
    %c0_i32_0 = arith.constant 0 : i32
    return %arg0, %c0_i32 : i32, i32
  }
}

module attributes {stable_mosaic.version = 11 : i64} {
  func.func @agg_final_kernel(%arg0: i32, %arg1: i32, %arg2: memref<256x256xi8, #tpu.memory_space<vmem>>, %arg3: memref<256x128xbf16, #tpu.memory_space<vmem>>, %arg4: memref<256x1xf32, #tpu.memory_space<vmem>>, %arg5: memref<1x128xf32, #tpu.memory_space<vmem>>, %arg6: memref<256x128xf32, #tpu.memory_space<vmem>>) attributes {dimension_semantics = [#tpu.dimension_semantics<parallel>, #tpu.dimension_semantics<arbitrary>], iteration_bounds = array<i64: 1, 1>, scalar_prefetch = 0 : i64, scratch_operands = 0 : i64, tpu.core_type = #tpu.core_type<tc>, window_params = [{transform_indices = @transform_0, window_bounds = array<i64: 256, 256>}, {transform_indices = @transform_1, window_bounds = array<i64: 256, 128>}, {transform_indices = @transform_2, window_bounds = array<i64: 256, 1>}, {pipeline_mode = #tpu.pipeline_mode<synchronous>, transform_indices = @transform_3, window_bounds = array<i64: 1, 128>}, {transform_indices = @transform_4, window_bounds = array<i64: 256, 128>}]} {
    %c0_i32 = arith.constant 0 : i32
    %0 = arith.cmpi eq, %arg1, %c0_i32 : i32
    %1 = arith.extui %0 : i1 to i32
    %c0_i32_0 = arith.constant 0 : i32
    %2 = arith.cmpi ne, %1, %c0_i32_0 : i32
    scf.if %2 {
      %cst_10 = arith.constant 0.000000e+00 : f32
      %14 = vector.broadcast %cst_10 : f32 to vector<256x128xf32>
      %c0_11 = arith.constant 0 : index
      %c0_12 = arith.constant 0 : index
      %15 = vector.load %arg6[%c0_11, %c0_12] : memref<256x128xf32, #tpu.memory_space<vmem>>, vector<256x128xf32>
      tpu.vector_store %arg6[%c0_11, %c0_12], %14 {strides = array<i32>} : memref<256x128xf32, #tpu.memory_space<vmem>>, vector<256x128xf32>,
    } else {
    }
    %c0 = arith.constant 0 : index
    %c0_1 = arith.constant 0 : index
    %3 = vector.load %arg2[%c0, %c0_1] : memref<256x256xi8, #tpu.memory_space<vmem>>, vector<256x256xi8>
    %4 = arith.sitofp %3 : vector<256x256xi8> to vector<256x256xf32>
    %5 = arith.truncf %4 : vector<256x256xf32> to vector<256x256xbf16>
    %c0_2 = arith.constant 0 : index
    %c0_3 = arith.constant 0 : index
    %6 = vector.load %arg6[%c0_2, %c0_3] : memref<256x128xf32, #tpu.memory_space<vmem>>, vector<256x128xf32>
    %c0_4 = arith.constant 0 : index
    %c0_5 = arith.constant 0 : index
    %7 = vector.load %arg3[%c0_4, %c0_5] : memref<256x128xbf16, #tpu.memory_space<vmem>>, vector<256x128xbf16>
    %cst = arith.constant dense<0.000000e+00> : vector<256x128xf32>
    %8 = tpu.matmul %5, %7, %cst {dimension_numbers = #tpu.dot_dimension_numbers<[1], [0], [0], [1], [0, 0, 1, 1], [], []>} : vector<256x256xbf16>, vector<256x128xbf16>, vector<256x128xf32> -> vector<256x128xf32>
    %9 = arith.addf %6, %8 : vector<256x128xf32>
    %c0_6 = arith.constant 0 : index
    %c0_7 = arith.constant 0 : index
    %10 = vector.load %arg6[%c0_6, %c0_7] : memref<256x128xf32, #tpu.memory_space<vmem>>, vector<256x128xf32>
    tpu.vector_store %arg6[%c0_6, %c0_7], %9 {strides = array<i32>} : memref<256x128xf32, #tpu.memory_space<vmem>>, vector<256x128xf32>,
    %c0_i32_8 = arith.constant 0 : i32
    %11 = arith.cmpi eq, %arg1, %c0_i32_8 : i32
    %12 = arith.extui %11 : i1 to i32
    %c0_i32_9 = arith.constant 0 : i32
    %13 = arith.cmpi ne, %12, %c0_i32_9 : i32
    scf.if %13 {
      %c0_10 = arith.constant 0 : index
      %c0_11 = arith.constant 0 : index
      %14 = vector.load %arg4[%c0_10, %c0_11] : memref<256x1xf32, #tpu.memory_space<vmem>>, vector<256x1xf32>
      %c0_12 = arith.constant 0 : index
      %c0_13 = arith.constant 0 : index
      %15 = vector.load %arg6[%c0_12, %c0_13] : memref<256x128xf32, #tpu.memory_space<vmem>>, vector<256x128xf32>
      %16 = vector.broadcast %14 : vector<256x1xf32> to vector<256x128xf32>
      %17 = arith.mulf %16, %15 : vector<256x128xf32>
      %c0_14 = arith.constant 0 : index
      %c0_15 = arith.constant 0 : index
      %18 = vector.load %arg5[%c0_14, %c0_15] : memref<1x128xf32, #tpu.memory_space<vmem>>, vector<1x128xf32>
      %19 = vector.broadcast %18 : vector<1x128xf32> to vector<256x128xf32>
      %20 = arith.addf %17, %19 : vector<256x128xf32>
      %c0_16 = arith.constant 0 : index
      %c0_17 = arith.constant 0 : index
      %21 = vector.load %arg6[%c0_16, %c0_17] : memref<256x128xf32, #tpu.memory_space<vmem>>, vector<256x128xf32>
      tpu.vector_store %arg6[%c0_16, %c0_17], %20 {strides = array<i32>} : memref<256x128xf32, #tpu.memory_space<vmem>>, vector<256x128xf32>,
    } else {
    }
    return
  }
  func.func @transform_0(%arg0: i32, %arg1: i32) -> (i32, i32) {
    %c0_i32 = arith.constant 0 : i32
    return %arg0, %arg1 : i32, i32
  }
  func.func @transform_1(%arg0: i32, %arg1: i32) -> (i32, i32) {
    %c0_i32 = arith.constant 0 : i32
    %c0_i32_0 = arith.constant 0 : i32
    return %arg1, %c0_i32 : i32, i32
  }
  func.func @transform_2(%arg0: i32, %arg1: i32) -> (i32, i32) {
    %c0_i32 = arith.constant 0 : i32
    %c0_i32_0 = arith.constant 0 : i32
    return %arg0, %c0_i32 : i32, i32
  }
  func.func @transform_3(%arg0: i32, %arg1: i32) -> (i32, i32) {
    %c0_i32 = arith.constant 0 : i32
    %c0_i32_0 = arith.constant 0 : i32
    %c0_i32_1 = arith.constant 0 : i32
    return %c0_i32, %c0_i32_0 : i32, i32
  }
  func.func @transform_4(%arg0: i32, %arg1: i32) -> (i32, i32) {
    %c0_i32 = arith.constant 0 : i32
    %c0_i32_0 = arith.constant 0 : i32
    return %arg0, %c0_i32 : i32, i32
  }
}

</mosaic_0001>

<llo_original>
// kernel: gcn_forward.3
$region0: #{gcn_forward.3}
  #allocation0 [shape = 'u32[]', space=smem, size = 0x4, offset = 0x4, fixed_abs, tag = 'smem constant byte address 0x4 - core index']
  #allocation1 [shape = 'u32[72,128]{1,0:T(1,128)}', space=vmem, size = 0x9000, scoped, tag = 'internal scratch']
  %s0 = inlined_call_operand.vmem [shape: bf16[256,128], index: 0, kind: input, shape index: {}]
  %s1 = inlined_call_operand.vmem [shape: bf16[128,128], index: 1, kind: input, shape index: {}]
  %s2 = inlined_call_operand.vmem [shape: f32[256,1], index: 2, kind: input, shape index: {}]
  %s3 = inlined_call_operand.vmem [shape: bf16[256,128], index: 3, kind: output, shape index: {}]
  %s4 = sld [smem:[#allocation0]]
  $region22: #{gcn_forward.3} parent=0
    _
  %s6 = ssub.s32 1, %s4
  %s7 = scalar_select 0, %s6, %s4
  // Predicated region
  $region2: #{gcn_forward.3} parent=0 // pred_check
    _
  $region3: #{gcn_forward.3} parent=0 // pred_check_branch
    %9 = sbr.rel (0) target = $region5
  $region4: #{gcn_forward.3} parent=0 // pred_region
    _
  $region5: #{gcn_forward.3} parent=0 // pred_fallthru
    _
  // Predicated region
  $region6: #{gcn_forward.3} parent=0 // pred_check
    _
  $region7: #{gcn_forward.3} parent=0 // pred_check_branch
    %11 = sbr.rel (0) target = $region9
  $region8: #{gcn_forward.3} parent=0 // pred_region
    _
  $region9: #{gcn_forward.3} parent=0 // pred_fallthru
    _
  // Predicated region
  $region10: #{gcn_forward.3} parent=0 // pred_check
    _
  $region11: #{gcn_forward.3} parent=0 // pred_check_branch
    %13 = sbr.rel (0) target = $region13
  $region12: #{gcn_forward.3} parent=0 // pred_region
    _
  $region13: #{gcn_forward.3} parent=0 // pred_fallthru
    _
  %v14 = vld [vmem:[%s0] sm:$0xf]
  %v15 = vld [vmem:[%s0 + $0x4] sm:$0xf]
  %v16 = vld [vmem:[%s0 + $0x8] sm:$0xf]
  %v17 = vld [vmem:[%s0 + $0xc] sm:$0xf]
  %v18 = vld [vmem:[%s0 + $0x10] sm:$0xf]
  %v19 = vld [vmem:[%s0 + $0x14] sm:$0xf]
  %v20 = vld [vmem:[%s0 + $0x18] sm:$0xf]
  %v21 = vld [vmem:[%s0 + $0x1c] sm:$0xf]
  %v22 = vld [vmem:[%s0 + $0x20] sm:$0xf]
  %v23 = vld [vmem:[%s0 + $0x24] sm:$0xf]
  %v24 = vld [vmem:[%s0 + $0x28] sm:$0xf]
  %v25 = vld [vmem:[%s0 + $0x2c] sm:$0xf]
  %v26 = vld [vmem:[%s0 + $0x30] sm:$0xf]
  %v27 = vld [vmem:[%s0 + $0x34] sm:$0xf]
  %v28 = vld [vmem:[%s0 + $0x38] sm:$0xf]
  %v29 = vld [vmem:[%s0 + $0x3c] sm:$0xf]
  %v30 = vld [vmem:[%s0 + $0x40] sm:$0xf]
  %v31 = vld [vmem:[%s0 + $0x44] sm:$0xf]
  %v32 = vld [vmem:[%s0 + $0x48] sm:$0xf]
  %v33 = vld [vmem:[%s0 + $0x4c] sm:$0xf]
  %v34 = vld [vmem:[%s0 + $0x50] sm:$0xf]
  %v35 = vld [vmem:[%s0 + $0x54] sm:$0xf]
  %v36 = vld [vmem:[%s0 + $0x58] sm:$0xf]
  %v37 = vld [vmem:[%s0 + $0x5c] sm:$0xf]
  %v38 = vld [vmem:[%s0 + $0x60] sm:$0xf]
  %v39 = vld [vmem:[%s0 + $0x64] sm:$0xf]
  %v40 = vld [vmem:[%s0 + $0x68] sm:$0xf]
  %v41 = vld [vmem:[%s0 + $0x6c] sm:$0xf]
  %v42 = vld [vmem:[%s0 + $0x70] sm:$0xf]
  %v43 = vld [vmem:[%s0 + $0x74] sm:$0xf]
  %v44 = vld [vmem:[%s0 + $0x78] sm:$0xf]
  %v45 = vld [vmem:[%s0 + $0x7c] sm:$0xf]
  %v46 = vld [vmem:[%s1] sm:$0xf]
  %v47 = vld [vmem:[%s1 + $0x4] sm:$0xf]
  %v48 = vld [vmem:[%s1 + $0x8] sm:$0xf]
  %v49 = vld [vmem:[%s1 + $0xc] sm:$0xf]
  %v50 = vld [vmem:[%s1 + $0x10] sm:$0xf]
  %v51 = vld [vmem:[%s1 + $0x14] sm:$0xf]
  %v52 = vld [vmem:[%s1 + $0x18] sm:$0xf]
  %v53 = vld [vmem:[%s1 + $0x1c] sm:$0xf]
  %v54 = vld [vmem:[%s1 + $0x20] sm:$0xf]
  %v55 = vld [vmem:[%s1 + $0x24] sm:$0xf]
  %v56 = vld [vmem:[%s1 + $0x28] sm:$0xf]
  %v57 = vld [vmem:[%s1 + $0x2c] sm:$0xf]
  %v58 = vld [vmem:[%s1 + $0x30] sm:$0xf]
  %v59 = vld [vmem:[%s1 + $0x34] sm:$0xf]
  %v60 = vld [vmem:[%s1 + $0x38] sm:$0xf]
  %v61 = vld [vmem:[%s1 + $0x3c] sm:$0xf]
  %v94 = vunpack.c.l.b16 %v14
  %v95 = vunpack.c.l.b16 %v15
  %v96 = vunpack.c.l.b16 %v16
  %v97 = vunpack.c.l.b16 %v17
  %v98 = vunpack.c.l.b16 %v18
  %v99 = vunpack.c.l.b16 %v19
  %v100 = vunpack.c.l.b16 %v20
  %v101 = vunpack.c.l.b16 %v21
  %v102 = vunpack.c.l.b16 %v22
  %v103 = vunpack.c.l.b16 %v23
  %v104 = vunpack.c.l.b16 %v24
  %v105 = vunpack.c.l.b16 %v25
  %v106 = vunpack.c.l.b16 %v26
  %v107 = vunpack.c.l.b16 %v27
  %v108 = vunpack.c.l.b16 %v28
  %v109 = vunpack.c.l.b16 %v29
  %v110 = vunpack.c.l.b16 %v30
  %v111 = vunpack.c.l.b16 %v31
  %v112 = vunpack.c.l.b16 %v32
  %v113 = vunpack.c.l.b16 %v33
  %v114 = vunpack.c.l.b16 %v34
  %v115 = vunpack.c.l.b16 %v35
  %v116 = vunpack.c.l.b16 %v36
  %v117 = vunpack.c.l.b16 %v37
  %v118 = vunpack.c.l.b16 %v38
  %v119 = vunpack.c.l.b16 %v39
  %v120 = vunpack.c.l.b16 %v40
  %v121 = vunpack.c.l.b16 %v41
  %v122 = vunpack.c.l.b16 %v42
  %v123 = vunpack.c.l.b16 %v43
  %v124 = vunpack.c.l.b16 %v44
  %v125 = vunpack.c.l.b16 %v45
  %v126 = vpack.c.b16 %v95, %v94
  %v127 = vpack.c.b16 %v97, %v96
  %v128 = vpack.c.b16 %v99, %v98
  %v129 = vpack.c.b16 %v101, %v100
  %v130 = vpack.c.b16 %v103, %v102
  %v131 = vpack.c.b16 %v105, %v104
  %v132 = vpack.c.b16 %v107, %v106
  %v133 = vpack.c.b16 %v109, %v108
  %v134 = vpack.c.b16 %v111, %v110
  %v135 = vpack.c.b16 %v113, %v112
  %v136 = vpack.c.b16 %v115, %v114
  %v137 = vpack.c.b16 %v117, %v116
  %v138 = vpack.c.b16 %v119, %v118
  %v139 = vpack.c.b16 %v121, %v120
  %v140 = vpack.c.b16 %v123, %v122
  %v141 = vpack.c.b16 %v125, %v124
  %v174 = vunpack.c.l.b16 %v46
  %v175 = vunpack.c.l.b16 %v47
  %v176 = vunpack.c.l.b16 %v48
  %v177 = vunpack.c.l.b16 %v49
  %v178 = vunpack.c.l.b16 %v50
  %v179 = vunpack.c.l.b16 %v51
  %v180 = vunpack.c.l.b16 %v52
  %v181 = vunpack.c.l.b16 %v53
  %v182 = vunpack.c.l.b16 %v54
  %v183 = vunpack.c.l.b16 %v55
  %v184 = vunpack.c.l.b16 %v56
  %v185 = vunpack.c.l.b16 %v57
  %v186 = vunpack.c.l.b16 %v58
  %v187 = vunpack.c.l.b16 %v59
  %v188 = vunpack.c.l.b16 %v60
  %v189 = vunpack.c.l.b16 %v61
  %v190 = vpack.c.b16 %v175, %v174
  %v191 = vpack.c.b16 %v177, %v176
  %v192 = vpack.c.b16 %v179, %v178
  %v193 = vpack.c.b16 %v181, %v180
  %v194 = vpack.c.b16 %v183, %v182
  %v195 = vpack.c.b16 %v185, %v184
  %v196 = vpack.c.b16 %v187, %v186
  %v197 = vpack.c.b16 %v189, %v188
  %206 = vmatpush.bf16.msra.mxu0 %v197
  %207 = vmatpush.bf16.msra.mxu0 %v196
  %208 = vmatpush.bf16.msra.mxu0 %v195
  %209 = vmatpush.bf16.msra.mxu0 %v194
  %210 = vmatpush.bf16.msra.mxu0 %v193
  %211 = vmatpush.bf16.msra.mxu0 %v192
  %212 = vmatpush.bf16.msra.mxu0 %v191
  %213 = vmatpush.bf16.msra.mxu0 %v190
  %214 = vmatmul.bf16.gmra.mxu0 %v126
  %v215 = vpop.f32.mrf.mxu0
  %v216 = vadd.f32 0.0, %v215
  %v217 = vpop.f32.mrf.mxu0
  %v218 = vadd.f32 0.0, %v217
  %219 = vmatmul.bf16.gmra.mxu0 %v127
  %v220 = vpop.f32.mrf.mxu0
  %v221 = vadd.f32 0.0, %v220
  %v222 = vpop.f32.mrf.mxu0
  %v223 = vadd.f32 0.0, %v222
  %224 = vmatmul.bf16.gmra.mxu0 %v128
  %v225 = vpop.f32.mrf.mxu0
  %v226 = vadd.f32 0.0, %v225
  %v227 = vpop.f32.mrf.mxu0
  %v228 = vadd.f32 0.0, %v227
  %229 = vmatmul.bf16.gmra.mxu0 %v129
  %v230 = vpop.f32.mrf.mxu0
  %v231 = vadd.f32 0.0, %v230
  %v232 = vpop.f32.mrf.mxu0
  %v233 = vadd.f32 0.0, %v232
  %234 = vmatmul.bf16.gmra.mxu0 %v130
  %v235 = vpop.f32.mrf.mxu0
  %v236 = vadd.f32 0.0, %v235
  %v237 = vpop.f32.mrf.mxu0
  %v238 = vadd.f32 0.0, %v237
  %239 = vmatmul.bf16.gmra.mxu0 %v131
  %v240 = vpop.f32.mrf.mxu0
  %v241 = vadd.f32 0.0, %v240
  %v242 = vpop.f32.mrf.mxu0
  %v243 = vadd.f32 0.0, %v242
  %244 = vmatmul.bf16.gmra.mxu0 %v132
  %v245 = vpop.f32.mrf.mxu0
  %v246 = vadd.f32 0.0, %v245
  %v247 = vpop.f32.mrf.mxu0
  %v248 = vadd.f32 0.0, %v247
  %249 = vmatmul.bf16.gmra.mxu0 %v133
  %v250 = vpop.f32.mrf.mxu0
  %v251 = vadd.f32 0.0, %v250
  %v252 = vpop.f32.mrf.mxu0
  %v253 = vadd.f32 0.0, %v252
  %254 = vmatmul.bf16.gmra.mxu0 %v134
  %v255 = vpop.f32.mrf.mxu0
  %v256 = vadd.f32 0.0, %v255
  %v257 = vpop.f32.mrf.mxu0
  %v258 = vadd.f32 0.0, %v257
  %259 = vmatmul.bf16.gmra.mxu0 %v135
  %v260 = vpop.f32.mrf.mxu0
  %v261 = vadd.f32 0.0, %v260
  %v262 = vpop.f32.mrf.mxu0
  %v263 = vadd.f32 0.0, %v262
  %264 = vmatmul.bf16.gmra.mxu0 %v136
  %v265 = vpop.f32.mrf.mxu0
  %v266 = vadd.f32 0.0, %v265
  %v267 = vpop.f32.mrf.mxu0
  %v268 = vadd.f32 0.0, %v267
  %269 = vmatmul.bf16.gmra.mxu0 %v137
  %v270 = vpop.f32.mrf.mxu0
  %v271 = vadd.f32 0.0, %v270
  %v272 = vpop.f32.mrf.mxu0
  %v273 = vadd.f32 0.0, %v272
  %274 = vmatmul.bf16.gmra.mxu0 %v138
  %v275 = vpop.f32.mrf.mxu0
  %v276 = vadd.f32 0.0, %v275
  %v277 = vpop.f32.mrf.mxu0
  %v278 = vadd.f32 0.0, %v277
  %279 = vmatmul.bf16.gmra.mxu0 %v139
  %v280 = vpop.f32.mrf.mxu0
  %v281 = vadd.f32 0.0, %v280
  %v282 = vpop.f32.mrf.mxu0
  %v283 = vadd.f32 0.0, %v282
  %284 = vmatmul.bf16.gmra.mxu0 %v140
  %v285 = vpop.f32.mrf.mxu0
  %v286 = vadd.f32 0.0, %v285
  %v287 = vpop.f32.mrf.mxu0
  %v288 = vadd.f32 0.0, %v287
  %289 = vmatmul.bf16.gmra.mxu0 %v141
  %v290 = vpop.f32.mrf.mxu0
  %v291 = vadd.f32 0.0, %v290
  %v292 = vpop.f32.mrf.mxu0
  %v293 = vadd.f32 0.0, %v292
  %294 = vdwg.mxu0
  %v295 = vld [vmem:[%s2] sm:$0xff]
  %v296 = vld [vmem:[%s2 + $0x8] sm:$0xff]
  %v297 = vld [vmem:[%s2 + $0x10] sm:$0xff]
  %v298 = vld [vmem:[%s2 + $0x18] sm:$0xff]
  %v299 = vld [vmem:[%s2 + $0x20] sm:$0xff]
  %v300 = vld [vmem:[%s2 + $0x28] sm:$0xff]
  %v301 = vld [vmem:[%s2 + $0x30] sm:$0xff]
  %v302 = vld [vmem:[%s2 + $0x38] sm:$0xff]
  %v303 = vld [vmem:[%s2 + $0x40] sm:$0xff]
  %v304 = vld [vmem:[%s2 + $0x48] sm:$0xff]
  %v305 = vld [vmem:[%s2 + $0x50] sm:$0xff]
  %v306 = vld [vmem:[%s2 + $0x58] sm:$0xff]
  %v307 = vld [vmem:[%s2 + $0x60] sm:$0xff]
  %v308 = vld [vmem:[%s2 + $0x68] sm:$0xff]
  %v309 = vld [vmem:[%s2 + $0x70] sm:$0xff]
  %v310 = vld [vmem:[%s2 + $0x78] sm:$0xff]
  %v311 = vld [vmem:[%s2 + $0x80] sm:$0xff]
  %v312 = vld [vmem:[%s2 + $0x88] sm:$0xff]
  %v313 = vld [vmem:[%s2 + $0x90] sm:$0xff]
  %v314 = vld [vmem:[%s2 + $0x98] sm:$0xff]
  %v315 = vld [vmem:[%s2 + $0xa0] sm:$0xff]
  %v316 = vld [vmem:[%s2 + $0xa8] sm:$0xff]
  %v317 = vld [vmem:[%s2 + $0xb0] sm:$0xff]
  %v318 = vld [vmem:[%s2 + $0xb8] sm:$0xff]
  %v319 = vld [vmem:[%s2 + $0xc0] sm:$0xff]
  %v320 = vld [vmem:[%s2 + $0xc8] sm:$0xff]
  %v321 = vld [vmem:[%s2 + $0xd0] sm:$0xff]
  %v322 = vld [vmem:[%s2 + $0xd8] sm:$0xff]
  %v323 = vld [vmem:[%s2 + $0xe0] sm:$0xff]
  %v324 = vld [vmem:[%s2 + $0xe8] sm:$0xff]
  %v325 = vld [vmem:[%s2 + $0xf0] sm:$0xff]
  %v326 = vld [vmem:[%s2 + $0xf8] sm:$0xff]
  %328 = vset.pattern.permute.xlu0 0
  %329 = vperm.xlu0 %328, %v295
  %v330 = vpop.permute.xlu0 %329
  %333 = vset.pattern.permute.xlu0 0
  %334 = vperm.xlu0 %333, %v296
  %v335 = vpop.permute.xlu0 %334
  %338 = vset.pattern.permute.xlu0 0
  %339 = vperm.xlu0 %338, %v297
  %v340 = vpop.permute.xlu0 %339
  %343 = vset.pattern.permute.xlu0 0
  %344 = vperm.xlu0 %343, %v298
  %v345 = vpop.permute.xlu0 %344
  %348 = vset.pattern.permute.xlu0 0
  %349 = vperm.xlu0 %348, %v299
  %v350 = vpop.permute.xlu0 %349
  %353 = vset.pattern.permute.xlu0 0
  %354 = vperm.xlu0 %353, %v300
  %v355 = vpop.permute.xlu0 %354
  %358 = vset.pattern.permute.xlu0 0
  %359 = vperm.xlu0 %358, %v301
  %v360 = vpop.permute.xlu0 %359
  %363 = vset.pattern.permute.xlu0 0
  %364 = vperm.xlu0 %363, %v302
  %v365 = vpop.permute.xlu0 %364
  %368 = vset.pattern.permute.xlu0 0
  %369 = vperm.xlu0 %368, %v303
  %v370 = vpop.permute.xlu0 %369
  %373 = vset.pattern.permute.xlu0 0
  %374 = vperm.xlu0 %373, %v304
  %v375 = vpop.permute.xlu0 %374
  %378 = vset.pattern.permute.xlu0 0
  %379 = vperm.xlu0 %378, %v305
  %v380 = vpop.permute.xlu0 %379
  %383 = vset.pattern.permute.xlu0 0
  %384 = vperm.xlu0 %383, %v306
  %v385 = vpop.permute.xlu0 %384
  %388 = vset.pattern.permute.xlu0 0
  %389 = vperm.xlu0 %388, %v307
  %v390 = vpop.permute.xlu0 %389
  %393 = vset.pattern.permute.xlu0 0
  %394 = vperm.xlu0 %393, %v308
  %v395 = vpop.permute.xlu0 %394
  %398 = vset.pattern.permute.xlu0 0
  %399 = vperm.xlu0 %398, %v309
  %v400 = vpop.permute.xlu0 %399
  %403 = vset.pattern.permute.xlu0 0
  %404 = vperm.xlu0 %403, %v310
  %v405 = vpop.permute.xlu0 %404
  %408 = vset.pattern.permute.xlu0 0
  %409 = vperm.xlu0 %408, %v311
  %v410 = vpop.permute.xlu0 %409
  %413 = vset.pattern.permute.xlu0 0
  %414 = vperm.xlu0 %413, %v312
  %v415 = vpop.permute.xlu0 %414
  %418 = vset.pattern.permute.xlu0 0
  %419 = vperm.xlu0 %418, %v313
  %v420 = vpop.permute.xlu0 %419
  %423 = vset.pattern.permute.xlu0 0
  %424 = vperm.xlu0 %423, %v314
  %v425 = vpop.permute.xlu0 %424
  %428 = vset.pattern.permute.xlu0 0
  %429 = vperm.xlu0 %428, %v315
  %v430 = vpop.permute.xlu0 %429
  %433 = vset.pattern.permute.xlu0 0
  %434 = vperm.xlu0 %433, %v316
  %v435 = vpop.permute.xlu0 %434
  %438 = vset.pattern.permute.xlu0 0
  %439 = vperm.xlu0 %438, %v317
  %v440 = vpop.permute.xlu0 %439
  %443 = vset.pattern.permute.xlu0 0
  %444 = vperm.xlu0 %443, %v318
  %v445 = vpop.permute.xlu0 %444
  %448 = vset.pattern.permute.xlu0 0
  %449 = vperm.xlu0 %448, %v319
  %v450 = vpop.permute.xlu0 %449
  %453 = vset.pattern.permute.xlu0 0
  %454 = vperm.xlu0 %453, %v320
  %v455 = vpop.permute.xlu0 %454
  %458 = vset.pattern.permute.xlu0 0
  %459 = vperm.xlu0 %458, %v321
  %v460 = vpop.permute.xlu0 %459
  %463 = vset.pattern.permute.xlu0 0
  %464 = vperm.xlu0 %463, %v322
  %v465 = vpop.permute.xlu0 %464
  %468 = vset.pattern.permute.xlu0 0
  %469 = vperm.xlu0 %468, %v323
  %v470 = vpop.permute.xlu0 %469
  %473 = vset.pattern.permute.xlu0 0
  %474 = vperm.xlu0 %473, %v324
  %v475 = vpop.permute.xlu0 %474
  %478 = vset.pattern.permute.xlu0 0
  %479 = vperm.xlu0 %478, %v325
  %v480 = vpop.permute.xlu0 %479
  %483 = vset.pattern.permute.xlu0 0
  %484 = vperm.xlu0 %483, %v326
  %v485 = vpop.permute.xlu0 %484
  %v487 = vmul.f32 %v330, %v216
  %v488 = vmul.f32 %v335, %v218
  %v489 = vmul.f32 %v340, %v221
  %v490 = vmul.f32 %v345, %v223
  %v491 = vmul.f32 %v350, %v226
  %v492 = vmul.f32 %v355, %v228
  %v493 = vmul.f32 %v360, %v231
  %v494 = vmul.f32 %v365, %v233
  %v495 = vmul.f32 %v370, %v236
  %v496 = vmul.f32 %v375, %v238
  %v497 = vmul.f32 %v380, %v241
  %v498 = vmul.f32 %v385, %v243
  %v499 = vmul.f32 %v390, %v246
  %v500 = vmul.f32 %v395, %v248
  %v501 = vmul.f32 %v400, %v251
  %v502 = vmul.f32 %v405, %v253
  %v503 = vmul.f32 %v410, %v256
  %v504 = vmul.f32 %v415, %v258
  %v505 = vmul.f32 %v420, %v261
  %v506 = vmul.f32 %v425, %v263
  %v507 = vmul.f32 %v430, %v266
  %v508 = vmul.f32 %v435, %v268
  %v509 = vmul.f32 %v440, %v271
  %v510 = vmul.f32 %v445, %v273
  %v511 = vmul.f32 %v450, %v276
  %v512 = vmul.f32 %v455, %v278
  %v513 = vmul.f32 %v460, %v281
  %v514 = vmul.f32 %v465, %v283
  %v515 = vmul.f32 %v470, %v286
  %v516 = vmul.f32 %v475, %v288
  %v517 = vmul.f32 %v480, %v291
  %v518 = vmul.f32 %v485, %v293
  %v519 = vpack.c.bf16 %v487, %v487
  %v520 = vpack.c.bf16 %v488, %v488
  %v521 = vpack.c.bf16 %v489, %v489
  %v522 = vpack.c.bf16 %v490, %v490
  %v523 = vpack.c.bf16 %v491, %v491
  %v524 = vpack.c.bf16 %v492, %v492
  %v525 = vpack.c.bf16 %v493, %v493
  %v526 = vpack.c.bf16 %v494, %v494
  %v527 = vpack.c.bf16 %v495, %v495
  %v528 = vpack.c.bf16 %v496, %v496
  %v529 = vpack.c.bf16 %v497, %v497
  %v530 = vpack.c.bf16 %v498, %v498
  %v531 = vpack.c.bf16 %v499, %v499
  %v532 = vpack.c.bf16 %v500, %v500
  %v533 = vpack.c.bf16 %v501, %v501
  %v534 = vpack.c.bf16 %v502, %v502
  %v535 = vpack.c.bf16 %v503, %v503
  %v536 = vpack.c.bf16 %v504, %v504
  %v537 = vpack.c.bf16 %v505, %v505
  %v538 = vpack.c.bf16 %v506, %v506
  %v539 = vpack.c.bf16 %v507, %v507
  %v540 = vpack.c.bf16 %v508, %v508
  %v541 = vpack.c.bf16 %v509, %v509
  %v542 = vpack.c.bf16 %v510, %v510
  %v543 = vpack.c.bf16 %v511, %v511
  %v544 = vpack.c.bf16 %v512, %v512
  %v545 = vpack.c.bf16 %v513, %v513
  %v546 = vpack.c.bf16 %v514, %v514
  %v547 = vpack.c.bf16 %v515, %v515
  %v548 = vpack.c.bf16 %v516, %v516
  %v549 = vpack.c.bf16 %v517, %v517
  %v550 = vpack.c.bf16 %v518, %v518
  %551 = vst [vmem:[%s3] sm:$0xf] %v519
  %552 = vst [vmem:[%s3 + $0x4] sm:$0xf] %v520
  %553 = vst [vmem:[%s3 + $0x8] sm:$0xf] %v521
  %554 = vst [vmem:[%s3 + $0xc] sm:$0xf] %v522
  %555 = vst [vmem:[%s3 + $0x10] sm:$0xf] %v523
  %556 = vst [vmem:[%s3 + $0x14] sm:$0xf] %v524
  %557 = vst [vmem:[%s3 + $0x18] sm:$0xf] %v525
  %558 = vst [vmem:[%s3 + $0x1c] sm:$0xf] %v526
  %559 = vst [vmem:[%s3 + $0x20] sm:$0xf] %v527
  %560 = vst [vmem:[%s3 + $0x24] sm:$0xf] %v528
  %561 = vst [vmem:[%s3 + $0x28] sm:$0xf] %v529
  %562 = vst [vmem:[%s3 + $0x2c] sm:$0xf] %v530
  %563 = vst [vmem:[%s3 + $0x30] sm:$0xf] %v531
  %564 = vst [vmem:[%s3 + $0x34] sm:$0xf] %v532
  %565 = vst [vmem:[%s3 + $0x38] sm:$0xf] %v533
  %566 = vst [vmem:[%s3 + $0x3c] sm:$0xf] %v534
  %567 = vst [vmem:[%s3 + $0x40] sm:$0xf] %v535
  %568 = vst [vmem:[%s3 + $0x44] sm:$0xf] %v536
  %569 = vst [vmem:[%s3 + $0x48] sm:$0xf] %v537
  %570 = vst [vmem:[%s3 + $0x4c] sm:$0xf] %v538
  %571 = vst [vmem:[%s3 + $0x50] sm:$0xf] %v539
  %572 = vst [vmem:[%s3 + $0x54] sm:$0xf] %v540
  %573 = vst [vmem:[%s3 + $0x58] sm:$0xf] %v541
  %574 = vst [vmem:[%s3 + $0x5c] sm:$0xf] %v542
  %575 = vst [vmem:[%s3 + $0x60] sm:$0xf] %v543
  %576 = vst [vmem:[%s3 + $0x64] sm:$0xf] %v544
  %577 = vst [vmem:[%s3 + $0x68] sm:$0xf] %v545
  %578 = vst [vmem:[%s3 + $0x6c] sm:$0xf] %v546
  %579 = vst [vmem:[%s3 + $0x70] sm:$0xf] %v547
  %580 = vst [vmem:[%s3 + $0x74] sm:$0xf] %v548
  %581 = vst [vmem:[%s3 + $0x78] sm:$0xf] %v549
  %582 = vst [vmem:[%s3 + $0x7c] sm:$0xf] %v550
  // Predicated region
  $region14: #{gcn_forward.3} parent=0 // pred_check
    _
  $region15: #{gcn_forward.3} parent=0 // pred_check_branch
    %584 = sbr.rel (0) target = $region17
  $region16: #{gcn_forward.3} parent=0 // pred_region
    _
  $region17: #{gcn_forward.3} parent=0 // pred_fallthru
    _
  // Predicated region
  $region18: #{gcn_forward.3} parent=0 // pred_check
    _
  $region19: #{gcn_forward.3} parent=0 // pred_check_branch
    %586 = sbr.rel (0) target = $region21
  $region20: #{gcn_forward.3} parent=0 // pred_region
    _
  $region21: #{gcn_forward.3} parent=0 // pred_fallthru
    _

// kernel: gcn_forward.5
$region0: #{gcn_forward.5}
  #allocation0 [shape = 'u32[]', space=smem, size = 0x4, offset = 0x4, fixed_abs, tag = 'smem constant byte address 0x4 - core index']
  #allocation1 [shape = 'u32[72,128]{1,0:T(1,128)}', space=vmem, size = 0x9000, scoped, tag = 'internal scratch']
  %s0 = inlined_call_operand.vmem [shape: s8[256,256], index: 0, kind: input, shape index: {}]
  %s1 = inlined_call_operand.vmem [shape: bf16[256,128], index: 1, kind: input, shape index: {}]
  %s2 = inlined_call_operand.vmem [shape: f32[256,1], index: 2, kind: input, shape index: {}]
  %s3 = inlined_call_operand.vmem [shape: f32[1,128], index: 3, kind: input, shape index: {}]
  %s4 = inlined_call_operand.vmem [shape: f32[256,128], index: 4, kind: output, shape index: {}]
  %s5 = sld [smem:[#allocation0]]
  $region34: #{gcn_forward.5} parent=0
    _
  %s7 = ssub.s32 1, %s5
  %s8 = scalar_select 0, %s7, %s5
  // Predicated region
  $region2: #{gcn_forward.5} parent=0 // pred_check
    _
  $region3: #{gcn_forward.5} parent=0 // pred_check_branch
    %10 = sbr.rel (0) target = $region5
  $region4: #{gcn_forward.5} parent=0 // pred_region
    _
  $region5: #{gcn_forward.5} parent=0 // pred_fallthru
    _
  // Predicated region
  $region6: #{gcn_forward.5} parent=0 // pred_check
    _
  $region7: #{gcn_forward.5} parent=0 // pred_check_branch
    %12 = sbr.rel (0) target = $region9
  $region8: #{gcn_forward.5} parent=0 // pred_region
    _
  $region9: #{gcn_forward.5} parent=0 // pred_fallthru
    _
  // Predicated region
  $region10: #{gcn_forward.5} parent=0 // pred_check
    _
  $region11: #{gcn_forward.5} parent=0 // pred_check_branch
    %14 = sbr.rel (0) target = $region13
  $region12: #{gcn_forward.5} parent=0 // pred_region
    _
  $region13: #{gcn_forward.5} parent=0 // pred_fallthru
    _
  // Predicated region
  $region14: #{gcn_forward.5} parent=0 // pred_check
    _
  $region15: #{gcn_forward.5} parent=0 // pred_check_branch
    %16 = sbr.rel (0) target = $region17
  $region16: #{gcn_forward.5} parent=0 // pred_region
    _
  $region17: #{gcn_forward.5} parent=0 // pred_fallthru
    _
  %p17 = scmp.eq.s32.totalorder 0, 0
  // Predicated region
  $region18: #{gcn_forward.5} parent=0 // pred_check
    %p18 = pneg %p17
  $region19: #{gcn_forward.5} parent=0 // pred_check_branch
    %20 = sbr.rel (%p18) target = $region21
  $region20: #{gcn_forward.5} parent=0 // pred_region
    %21 = vst [vmem:[%s4] sm:$0xff] 0.0
    %22 = vst [vmem:[%s4 + $0x8] sm:$0xff] 0.0
    %23 = vst [vmem:[%s4 + $0x10] sm:$0xff] 0.0
    %24 = vst [vmem:[%s4 + $0x18] sm:$0xff] 0.0
    %25 = vst [vmem:[%s4 + $0x20] sm:$0xff] 0.0
    %26 = vst [vmem:[%s4 + $0x28] sm:$0xff] 0.0
    %27 = vst [vmem:[%s4 + $0x30] sm:$0xff] 0.0
    %28 = vst [vmem:[%s4 + $0x38] sm:$0xff] 0.0
    %29 = vst [vmem:[%s4 + $0x40] sm:$0xff] 0.0
    %30 = vst [vmem:[%s4 + $0x48] sm:$0xff] 0.0
    %31 = vst [vmem:[%s4 + $0x50] sm:$0xff] 0.0
    %32 = vst [vmem:[%s4 + $0x58] sm:$0xff] 0.0
    %33 = vst [vmem:[%s4 + $0x60] sm:$0xff] 0.0
    %34 = vst [vmem:[%s4 + $0x68] sm:$0xff] 0.0
    %35 = vst [vmem:[%s4 + $0x70] sm:$0xff] 0.0
    %36 = vst [vmem:[%s4 + $0x78] sm:$0xff] 0.0
    %37 = vst [vmem:[%s4 + $0x80] sm:$0xff] 0.0
    %38 = vst [vmem:[%s4 + $0x88] sm:$0xff] 0.0
    %39 = vst [vmem:[%s4 + $0x90] sm:$0xff] 0.0
    %40 = vst [vmem:[%s4 + $0x98] sm:$0xff] 0.0
    %41 = vst [vmem:[%s4 + $0xa0] sm:$0xff] 0.0
    %42 = vst [vmem:[%s4 + $0xa8] sm:$0xff] 0.0
    %43 = vst [vmem:[%s4 + $0xb0] sm:$0xff] 0.0
    %44 = vst [vmem:[%s4 + $0xb8] sm:$0xff] 0.0
    %45 = vst [vmem:[%s4 + $0xc0] sm:$0xff] 0.0
    %46 = vst [vmem:[%s4 + $0xc8] sm:$0xff] 0.0
    %47 = vst [vmem:[%s4 + $0xd0] sm:$0xff] 0.0
    %48 = vst [vmem:[%s4 + $0xd8] sm:$0xff] 0.0
    %49 = vst [vmem:[%s4 + $0xe0] sm:$0xff] 0.0
    %50 = vst [vmem:[%s4 + $0xe8] sm:$0xff] 0.0
    %51 = vst [vmem:[%s4 + $0xf0] sm:$0xff] 0.0
    %52 = vst [vmem:[%s4 + $0xf8] sm:$0xff] 0.0
  $region21: #{gcn_forward.5} parent=0 // pred_fallthru
    _
  %v53 = vld [vmem:[%s0] sm:$0xff]
  %v54 = vld [vmem:[%s0 + $0x8] sm:$0xff]
  %v55 = vld [vmem:[%s0 + $0x10] sm:$0xff]
  %v56 = vld [vmem:[%s0 + $0x18] sm:$0xff]
  %v57 = vld [vmem:[%s0 + $0x20] sm:$0xff]
  %v58 = vld [vmem:[%s0 + $0x28] sm:$0xff]
  %v59 = vld [vmem:[%s0 + $0x30] sm:$0xff]
  %v60 = vld [vmem:[%s0 + $0x38] sm:$0xff]
  %v61 = vld [vmem:[%s0 + $0x40] sm:$0xff]
  %v62 = vld [vmem:[%s0 + $0x48] sm:$0xff]
  %v63 = vld [vmem:[%s0 + $0x50] sm:$0xff]
  %v64 = vld [vmem:[%s0 + $0x58] sm:$0xff]
  %v65 = vld [vmem:[%s0 + $0x60] sm:$0xff]
  %v66 = vld [vmem:[%s0 + $0x68] sm:$0xff]
  %v67 = vld [vmem:[%s0 + $0x70] sm:$0xff]
  %v68 = vld [vmem:[%s0 + $0x78] sm:$0xff]
  %v69 = vunpack.c.0.s8 %v53
  %v70 = vunpack.c.0.s8 %v54
  %v71 = vunpack.c.1.s8 %v53
  %v72 = vunpack.c.1.s8 %v54
  %v73 = vunpack.c.2.s8 %v53
  %v74 = vunpack.c.2.s8 %v54
  %v75 = vunpack.c.3.s8 %v53
  %v76 = vunpack.c.3.s8 %v54
  %v77 = vunpack.c.0.s8 %v55
  %v78 = vunpack.c.0.s8 %v56
  %v79 = vunpack.c.1.s8 %v55
  %v80 = vunpack.c.1.s8 %v56
  %v81 = vunpack.c.2.s8 %v55
  %v82 = vunpack.c.2.s8 %v56
  %v83 = vunpack.c.3.s8 %v55
  %v84 = vunpack.c.3.s8 %v56
  %v85 = vunpack.c.0.s8 %v57
  %v86 = vunpack.c.0.s8 %v58
  %v87 = vunpack.c.1.s8 %v57
  %v88 = vunpack.c.1.s8 %v58
  %v89 = vunpack.c.2.s8 %v57
  %v90 = vunpack.c.2.s8 %v58
  %v91 = vunpack.c.3.s8 %v57
  %v92 = vunpack.c.3.s8 %v58
  %v93 = vunpack.c.0.s8 %v59
  %v94 = vunpack.c.0.s8 %v60
  %v95 = vunpack.c.1.s8 %v59
  %v96 = vunpack.c.1.s8 %v60
  %v97 = vunpack.c.2.s8 %v59
  %v98 = vunpack.c.2.s8 %v60
  %v99 = vunpack.c.3.s8 %v59
  %v100 = vunpack.c.3.s8 %v60
  %v101 = vunpack.c.0.s8 %v61
  %v102 = vunpack.c.0.s8 %v62
  %v103 = vunpack.c.1.s8 %v61
  %v104 = vunpack.c.1.s8 %v62
  %v105 = vunpack.c.2.s8 %v61
  %v106 = vunpack.c.2.s8 %v62
  %v107 = vunpack.c.3.s8 %v61
  %v108 = vunpack.c.3.s8 %v62
  %v109 = vunpack.c.0.s8 %v63
  %v110 = vunpack.c.0.s8 %v64
  %v111 = vunpack.c.1.s8 %v63
  %v112 = vunpack.c.1.s8 %v64
  %v113 = vunpack.c.2.s8 %v63
  %v114 = vunpack.c.2.s8 %v64
  %v115 = vunpack.c.3.s8 %v63
  %v116 = vunpack.c.3.s8 %v64
  %v117 = vunpack.c.0.s8 %v65
  %v118 = vunpack.c.0.s8 %v66
  %v119 = vunpack.c.1.s8 %v65
  %v120 = vunpack.c.1.s8 %v66
  %v121 = vunpack.c.2.s8 %v65
  %v122 = vunpack.c.2.s8 %v66
  %v123 = vunpack.c.3.s8 %v65
  %v124 = vunpack.c.3.s8 %v66
  %v125 = vunpack.c.0.s8 %v67
  %v126 = vunpack.c.0.s8 %v68
  %v127 = vunpack.c.1.s8 %v67
  %v128 = vunpack.c.1.s8 %v68
  %v129 = vunpack.c.2.s8 %v67
  %v130 = vunpack.c.2.s8 %v68
  %v131 = vunpack.c.3.s8 %v67
  %v132 = vunpack.c.3.s8 %v68
  %v133 = vcvt.s32.f32 %v69
  %v134 = vcvt.s32.f32 %v70
  %v135 = vcvt.s32.f32 %v71
  %v136 = vcvt.s32.f32 %v72
  %v137 = vcvt.s32.f32 %v73
  %v138 = vcvt.s32.f32 %v74
  %v139 = vcvt.s32.f32 %v75
  %v140 = vcvt.s32.f32 %v76
  %v141 = vcvt.s32.f32 %v77
  %v142 = vcvt.s32.f32 %v78
  %v143 = vcvt.s32.f32 %v79
  %v144 = vcvt.s32.f32 %v80
  %v145 = vcvt.s32.f32 %v81
  %v146 = vcvt.s32.f32 %v82
  %v147 = vcvt.s32.f32 %v83
  %v148 = vcvt.s32.f32 %v84
  %v149 = vcvt.s32.f32 %v85
  %v150 = vcvt.s32.f32 %v86
  %v151 = vcvt.s32.f32 %v87
  %v152 = vcvt.s32.f32 %v88
  %v153 = vcvt.s32.f32 %v89
  %v154 = vcvt.s32.f32 %v90
  %v155 = vcvt.s32.f32 %v91
  %v156 = vcvt.s32.f32 %v92
  %v157 = vcvt.s32.f32 %v93
  %v158 = vcvt.s32.f32 %v94
  %v159 = vcvt.s32.f32 %v95
  %v160 = vcvt.s32.f32 %v96
  %v161 = vcvt.s32.f32 %v97
  %v162 = vcvt.s32.f32 %v98
  %v163 = vcvt.s32.f32 %v99
  %v164 = vcvt.s32.f32 %v100
  %v165 = vcvt.s32.f32 %v101
  %v166 = vcvt.s32.f32 %v102
  %v167 = vcvt.s32.f32 %v103
  %v168 = vcvt.s32.f32 %v104
  %v169 = vcvt.s32.f32 %v105
  %v170 = vcvt.s32.f32 %v106
  %v171 = vcvt.s32.f32 %v107
  %v172 = vcvt.s32.f32 %v108
  %v173 = vcvt.s32.f32 %v109
  %v174 = vcvt.s32.f32 %v110
  %v175 = vcvt.s32.f32 %v111
  %v176 = vcvt.s32.f32 %v112
  %v177 = vcvt.s32.f32 %v113
  %v178 = vcvt.s32.f32 %v114
  %v179 = vcvt.s32.f32 %v115
  %v180 = vcvt.s32.f32 %v116
  %v181 = vcvt.s32.f32 %v117
  %v182 = vcvt.s32.f32 %v118
  %v183 = vcvt.s32.f32 %v119
  %v184 = vcvt.s32.f32 %v120
  %v185 = vcvt.s32.f32 %v121
  %v186 = vcvt.s32.f32 %v122
  %v187 = vcvt.s32.f32 %v123
  %v188 = vcvt.s32.f32 %v124
  %v189 = vcvt.s32.f32 %v125
  %v190 = vcvt.s32.f32 %v126
  %v191 = vcvt.s32.f32 %v127
  %v192 = vcvt.s32.f32 %v128
  %v193 = vcvt.s32.f32 %v129
  %v194 = vcvt.s32.f32 %v130
  %v195 = vcvt.s32.f32 %v131
  %v196 = vcvt.s32.f32 %v132
  %v197 = vpack.c.bf16 %v135, %v133
  %v198 = vpack.c.bf16 %v136, %v134
  %v199 = vpack.c.bf16 %v139, %v137
  %v200 = vpack.c.bf16 %v140, %v138
  %v201 = vpack.c.bf16 %v143, %v141
  %v202 = vpack.c.bf16 %v144, %v142
  %v203 = vpack.c.bf16 %v147, %v145
  %v204 = vpack.c.bf16 %v148, %v146
  %v205 = vpack.c.bf16 %v151, %v149
  %v206 = vpack.c.bf16 %v152, %v150
  %v207 = vpack.c.bf16 %v155, %v153
  %v208 = vpack.c.bf16 %v156, %v154
  %v209 = vpack.c.bf16 %v159, %v157
  %v210 = vpack.c.bf16 %v160, %v158
  %v211 = vpack.c.bf16 %v163, %v161
  %v212 = vpack.c.bf16 %v164, %v162
  %v213 = vpack.c.bf16 %v167, %v165
  %v214 = vpack.c.bf16 %v168, %v166
  %v215 = vpack.c.bf16 %v171, %v169
  %v216 = vpack.c.bf16 %v172, %v170
  %v217 = vpack.c.bf16 %v175, %v173
  %v218 = vpack.c.bf16 %v176, %v174
  %v219 = vpack.c.bf16 %v179, %v177
  %v220 = vpack.c.bf16 %v180, %v178
  %v221 = vpack.c.bf16 %v183, %v181
  %v222 = vpack.c.bf16 %v184, %v182
  %v223 = vpack.c.bf16 %v187, %v185
  %v224 = vpack.c.bf16 %v188, %v186
  %v225 = vpack.c.bf16 %v191, %v189
  %v226 = vpack.c.bf16 %v192, %v190
  %v227 = vpack.c.bf16 %v195, %v193
  %v228 = vpack.c.bf16 %v196, %v194
  %v229 = vld [vmem:[%s4] sm:$0xff]
  %v230 = vld [vmem:[%s4 + $0x8] sm:$0xff]
  %v231 = vld [vmem:[%s4 + $0x10] sm:$0xff]
  %v232 = vld [vmem:[%s4 + $0x18] sm:$0xff]
  %v233 = vld [vmem:[%s4 + $0x20] sm:$0xff]
  %v234 = vld [vmem:[%s4 + $0x28] sm:$0xff]
  %v235 = vld [vmem:[%s4 + $0x30] sm:$0xff]
  %v236 = vld [vmem:[%s4 + $0x38] sm:$0xff]
  %v237 = vld [vmem:[%s4 + $0x40] sm:$0xff]
  %v238 = vld [vmem:[%s4 + $0x48] sm:$0xff]
  %v239 = vld [vmem:[%s4 + $0x50] sm:$0xff]
  %v240 = vld [vmem:[%s4 + $0x58] sm:$0xff]
  %v241 = vld [vmem:[%s4 + $0x60] sm:$0xff]
  %v242 = vld [vmem:[%s4 + $0x68] sm:$0xff]
  %v243 = vld [vmem:[%s4 + $0x70] sm:$0xff]
  %v244 = vld [vmem:[%s4 + $0x78] sm:$0xff]
  %v245 = vld [vmem:[%s4 + $0x80] sm:$0xff]
  %v246 = vld [vmem:[%s4 + $0x88] sm:$0xff]
  %v247 = vld [vmem:[%s4 + $0x90] sm:$0xff]
  %v248 = vld [vmem:[%s4 + $0x98] sm:$0xff]
  %v249 = vld [vmem:[%s4 + $0xa0] sm:$0xff]
  %v250 = vld [vmem:[%s4 + $0xa8] sm:$0xff]
  %v251 = vld [vmem:[%s4 + $0xb0] sm:$0xff]
  %v252 = vld [vmem:[%s4 + $0xb8] sm:$0xff]
  %v253 = vld [vmem:[%s4 + $0xc0] sm:$0xff]
  %v254 = vld [vmem:[%s4 + $0xc8] sm:$0xff]
  %v255 = vld [vmem:[%s4 + $0xd0] sm:$0xff]
  %v256 = vld [vmem:[%s4 + $0xd8] sm:$0xff]
  %v257 = vld [vmem:[%s4 + $0xe0] sm:$0xff]
  %v258 = vld [vmem:[%s4 + $0xe8] sm:$0xff]
  %v259 = vld [vmem:[%s4 + $0xf0] sm:$0xff]
  %v260 = vld [vmem:[%s4 + $0xf8] sm:$0xff]
  %v261 = vld [vmem:[%s1] sm:$0xf]
  %v262 = vld [vmem:[%s1 + $0x4] sm:$0xf]
  %v263 = vld [vmem:[%s1 + $0x8] sm:$0xf]
  %v264 = vld [vmem:[%s1 + $0xc] sm:$0xf]
  %v265 = vld [vmem:[%s1 + $0x10] sm:$0xf]
  %v266 = vld [vmem:[%s1 + $0x14] sm:$0xf]
  %v267 = vld [vmem:[%s1 + $0x18] sm:$0xf]
  %v268 = vld [vmem:[%s1 + $0x1c] sm:$0xf]
  %v269 = vld [vmem:[%s1 + $0x20] sm:$0xf]
  %v270 = vld [vmem:[%s1 + $0x24] sm:$0xf]
  %v271 = vld [vmem:[%s1 + $0x28] sm:$0xf]
  %v272 = vld [vmem:[%s1 + $0x2c] sm:$0xf]
  %v273 = vld [vmem:[%s1 + $0x30] sm:$0xf]
  %v274 = vld [vmem:[%s1 + $0x34] sm:$0xf]
  %v275 = vld [vmem:[%s1 + $0x38] sm:$0xf]
  %v276 = vld [vmem:[%s1 + $0x3c] sm:$0xf]
  %v277 = vld [vmem:[%s1 + $0x40] sm:$0xf]
  %v278 = vld [vmem:[%s1 + $0x44] sm:$0xf]
  %v279 = vld [vmem:[%s1 + $0x48] sm:$0xf]
  %v280 = vld [vmem:[%s1 + $0x4c] sm:$0xf]
  %v281 = vld [vmem:[%s1 + $0x50] sm:$0xf]
  %v282 = vld [vmem:[%s1 + $0x54] sm:$0xf]
  %v283 = vld [vmem:[%s1 + $0x58] sm:$0xf]
  %v284 = vld [vmem:[%s1 + $0x5c] sm:$0xf]
  %v285 = vld [vmem:[%s1 + $0x60] sm:$0xf]
  %v286 = vld [vmem:[%s1 + $0x64] sm:$0xf]
  %v287 = vld [vmem:[%s1 + $0x68] sm:$0xf]
  %v288 = vld [vmem:[%s1 + $0x6c] sm:$0xf]
  %v289 = vld [vmem:[%s1 + $0x70] sm:$0xf]
  %v290 = vld [vmem:[%s1 + $0x74] sm:$0xf]
  %v291 = vld [vmem:[%s1 + $0x78] sm:$0xf]
  %v292 = vld [vmem:[%s1 + $0x7c] sm:$0xf]
  %v325 = vunpack.c.l.b16 %v261
  %v326 = vunpack.c.l.b16 %v262
  %v327 = vunpack.c.l.b16 %v263
  %v328 = vunpack.c.l.b16 %v264
  %v329 = vunpack.c.l.b16 %v265
  %v330 = vunpack.c.l.b16 %v266
  %v331 = vunpack.c.l.b16 %v267
  %v332 = vunpack.c.l.b16 %v268
  %v333 = vunpack.c.l.b16 %v269
  %v334 = vunpack.c.l.b16 %v270
  %v335 = vunpack.c.l.b16 %v271
  %v336 = vunpack.c.l.b16 %v272
  %v337 = vunpack.c.l.b16 %v273
  %v338 = vunpack.c.l.b16 %v274
  %v339 = vunpack.c.l.b16 %v275
  %v340 = vunpack.c.l.b16 %v276
  %v341 = vunpack.c.l.b16 %v277
  %v342 = vunpack.c.l.b16 %v278
  %v343 = vunpack.c.l.b16 %v279
  %v344 = vunpack.c.l.b16 %v280
  %v345 = vunpack.c.l.b16 %v281
  %v346 = vunpack.c.l.b16 %v282
  %v347 = vunpack.c.l.b16 %v283
  %v348 = vunpack.c.l.b16 %v284
  %v349 = vunpack.c.l.b16 %v285
  %v350 = vunpack.c.l.b16 %v286
  %v351 = vunpack.c.l.b16 %v287
  %v352 = vunpack.c.l.b16 %v288
  %v353 = vunpack.c.l.b16 %v289
  %v354 = vunpack.c.l.b16 %v290
  %v355 = vunpack.c.l.b16 %v291
  %v356 = vunpack.c.l.b16 %v292
  %v357 = vpack.c.b16 %v326, %v325
  %v358 = vpack.c.b16 %v328, %v327
  %v359 = vpack.c.b16 %v330, %v329
  %v360 = vpack.c.b16 %v332, %v331
  %v361 = vpack.c.b16 %v334, %v333
  %v362 = vpack.c.b16 %v336, %v335
  %v363 = vpack.c.b16 %v338, %v337
  %v364 = vpack.c.b16 %v340, %v339
  %v365 = vpack.c.b16 %v342, %v341
  %v366 = vpack.c.b16 %v344, %v343
  %v367 = vpack.c.b16 %v346, %v345
  %v368 = vpack.c.b16 %v348, %v347
  %v369 = vpack.c.b16 %v350, %v349
  %v370 = vpack.c.b16 %v352, %v351
  %v371 = vpack.c.b16 %v354, %v353
  %v372 = vpack.c.b16 %v356, %v355
  %389 = vmatpush.bf16.msra.mxu0 %v364
  %390 = vmatpush.bf16.msra.mxu0 %v363
  %391 = vmatpush.bf16.msra.mxu0 %v362
  %392 = vmatpush.bf16.msra.mxu0 %v361
  %393 = vmatpush.bf16.msra.mxu0 %v360
  %394 = vmatpush.bf16.msra.mxu0 %v359
  %395 = vmatpush.bf16.msra.mxu0 %v358
  %396 = vmatpush.bf16.msra.mxu0 %v357
  %397 = vmatmul.bf16.gmra.mxu0 %v197
  %v398 = vpop.f32.mrf.mxu0
  %v399 = vadd.f32 0.0, %v398
  %v400 = vpop.f32.mrf.mxu0
  %v401 = vadd.f32 0.0, %v400
  %402 = vmatmul.bf16.gmra.mxu0 %v199
  %v403 = vpop.f32.mrf.mxu0
  %v404 = vadd.f32 0.0, %v403
  %v405 = vpop.f32.mrf.mxu0
  %v406 = vadd.f32 0.0, %v405
  %407 = vmatmul.bf16.gmra.mxu0 %v201
  %v408 = vpop.f32.mrf.mxu0
  %v409 = vadd.f32 0.0, %v408
  %v410 = vpop.f32.mrf.mxu0
  %v411 = vadd.f32 0.0, %v410
  %412 = vmatmul.bf16.gmra.mxu0 %v203
  %v413 = vpop.f32.mrf.mxu0
  %v414 = vadd.f32 0.0, %v413
  %v415 = vpop.f32.mrf.mxu0
  %v416 = vadd.f32 0.0, %v415
  %417 = vmatmul.bf16.gmra.mxu0 %v205
  %v418 = vpop.f32.mrf.mxu0
  %v419 = vadd.f32 0.0, %v418
  %v420 = vpop.f32.mrf.mxu0
  %v421 = vadd.f32 0.0, %v420
  %422 = vmatmul.bf16.gmra.mxu0 %v207
  %v423 = vpop.f32.mrf.mxu0
  %v424 = vadd.f32 0.0, %v423
  %v425 = vpop.f32.mrf.mxu0
  %v426 = vadd.f32 0.0, %v425
  %427 = vmatmul.bf16.gmra.mxu0 %v209
  %v428 = vpop.f32.mrf.mxu0
  %v429 = vadd.f32 0.0, %v428
  %v430 = vpop.f32.mrf.mxu0
  %v431 = vadd.f32 0.0, %v430
  %432 = vmatmul.bf16.gmra.mxu0 %v211
  %v433 = vpop.f32.mrf.mxu0
  %v434 = vadd.f32 0.0, %v433
  %v435 = vpop.f32.mrf.mxu0
  %v436 = vadd.f32 0.0, %v435
  %437 = vmatmul.bf16.gmra.mxu0 %v213
  %v438 = vpop.f32.mrf.mxu0
  %v439 = vadd.f32 0.0, %v438
  %v440 = vpop.f32.mrf.mxu0
  %v441 = vadd.f32 0.0, %v440
  %442 = vmatmul.bf16.gmra.mxu0 %v215
  %v443 = vpop.f32.mrf.mxu0
  %v444 = vadd.f32 0.0, %v443
  %v445 = vpop.f32.mrf.mxu0
  %v446 = vadd.f32 0.0, %v445
  %447 = vmatmul.bf16.gmra.mxu0 %v217
  %v448 = vpop.f32.mrf.mxu0
  %v449 = vadd.f32 0.0, %v448
  %v450 = vpop.f32.mrf.mxu0
  %v451 = vadd.f32 0.0, %v450
  %452 = vmatmul.bf16.gmra.mxu0 %v219
  %v453 = vpop.f32.mrf.mxu0
  %v454 = vadd.f32 0.0, %v453
  %v455 = vpop.f32.mrf.mxu0
  %v456 = vadd.f32 0.0, %v455
  %457 = vmatmul.bf16.gmra.mxu0 %v221
  %v458 = vpop.f32.mrf.mxu0
  %v459 = vadd.f32 0.0, %v458
  %v460 = vpop.f32.mrf.mxu0
  %v461 = vadd.f32 0.0, %v460
  %462 = vmatmul.bf16.gmra.mxu0 %v223
  %v463 = vpop.f32.mrf.mxu0
  %v464 = vadd.f32 0.0, %v463
  %v465 = vpop.f32.mrf.mxu0
  %v466 = vadd.f32 0.0, %v465
  %467 = vmatmul.bf16.gmra.mxu0 %v225
  %v468 = vpop.f32.mrf.mxu0
  %v469 = vadd.f32 0.0, %v468
  %v470 = vpop.f32.mrf.mxu0
  %v471 = vadd.f32 0.0, %v470
  %472 = vmatmul.bf16.gmra.mxu0 %v227
  %v473 = vpop.f32.mrf.mxu0
  %v474 = vadd.f32 0.0, %v473
  %v475 = vpop.f32.mrf.mxu0
  %v476 = vadd.f32 0.0, %v475
  %477 = vdwg.mxu0
  %478 = vmatpush.bf16.msra.mxu0 %v372
  %479 = vmatpush.bf16.msra.mxu0 %v371
  %480 = vmatpush.bf16.msra.mxu0 %v370
  %481 = vmatpush.bf16.msra.mxu0 %v369
  %482 = vmatpush.bf16.msra.mxu0 %v368
  %483 = vmatpush.bf16.msra.mxu0 %v367
  %484 = vmatpush.bf16.msra.mxu0 %v366
  %485 = vmatpush.bf16.msra.mxu0 %v365
  %486 = vmatmul.bf16.gmra.mxu0 %v198
  %v487 = vpop.f32.mrf.mxu0
  %v488 = vadd.f32 %v399, %v487
  %v489 = vpop.f32.mrf.mxu0
  %v490 = vadd.f32 %v401, %v489
  %491 = vmatmul.bf16.gmra.mxu0 %v200
  %v492 = vpop.f32.mrf.mxu0
  %v493 = vadd.f32 %v404, %v492
  %v494 = vpop.f32.mrf.mxu0
  %v495 = vadd.f32 %v406, %v494
  %496 = vmatmul.bf16.gmra.mxu0 %v202
  %v497 = vpop.f32.mrf.mxu0
  %v498 = vadd.f32 %v409, %v497
  %v499 = vpop.f32.mrf.mxu0
  %v500 = vadd.f32 %v411, %v499
  %501 = vmatmul.bf16.gmra.mxu0 %v204
  %v502 = vpop.f32.mrf.mxu0
  %v503 = vadd.f32 %v414, %v502
  %v504 = vpop.f32.mrf.mxu0
  %v505 = vadd.f32 %v416, %v504
  %506 = vmatmul.bf16.gmra.mxu0 %v206
  %v507 = vpop.f32.mrf.mxu0
  %v508 = vadd.f32 %v419, %v507
  %v509 = vpop.f32.mrf.mxu0
  %v510 = vadd.f32 %v421, %v509
  %511 = vmatmul.bf16.gmra.mxu0 %v208
  %v512 = vpop.f32.mrf.mxu0
  %v513 = vadd.f32 %v424, %v512
  %v514 = vpop.f32.mrf.mxu0
  %v515 = vadd.f32 %v426, %v514
  %516 = vmatmul.bf16.gmra.mxu0 %v210
  %v517 = vpop.f32.mrf.mxu0
  %v518 = vadd.f32 %v429, %v517
  %v519 = vpop.f32.mrf.mxu0
  %v520 = vadd.f32 %v431, %v519
  %521 = vmatmul.bf16.gmra.mxu0 %v212
  %v522 = vpop.f32.mrf.mxu0
  %v523 = vadd.f32 %v434, %v522
  %v524 = vpop.f32.mrf.mxu0
  %v525 = vadd.f32 %v436, %v524
  %526 = vmatmul.bf16.gmra.mxu0 %v214
  %v527 = vpop.f32.mrf.mxu0
  %v528 = vadd.f32 %v439, %v527
  %v529 = vpop.f32.mrf.mxu0
  %v530 = vadd.f32 %v441, %v529
  %531 = vmatmul.bf16.gmra.mxu0 %v216
  %v532 = vpop.f32.mrf.mxu0
  %v533 = vadd.f32 %v444, %v532
  %v534 = vpop.f32.mrf.mxu0
  %v535 = vadd.f32 %v446, %v534
  %536 = vmatmul.bf16.gmra.mxu0 %v218
  %v537 = vpop.f32.mrf.mxu0
  %v538 = vadd.f32 %v449, %v537
  %v539 = vpop.f32.mrf.mxu0
  %v540 = vadd.f32 %v451, %v539
  %541 = vmatmul.bf16.gmra.mxu0 %v220
  %v542 = vpop.f32.mrf.mxu0
  %v543 = vadd.f32 %v454, %v542
  %v544 = vpop.f32.mrf.mxu0
  %v545 = vadd.f32 %v456, %v544
  %546 = vmatmul.bf16.gmra.mxu0 %v222
  %v547 = vpop.f32.mrf.mxu0
  %v548 = vadd.f32 %v459, %v547
  %v549 = vpop.f32.mrf.mxu0
  %v550 = vadd.f32 %v461, %v549
  %551 = vmatmul.bf16.gmra.mxu0 %v224
  %v552 = vpop.f32.mrf.mxu0
  %v553 = vadd.f32 %v464, %v552
  %v554 = vpop.f32.mrf.mxu0
  %v555 = vadd.f32 %v466, %v554
  %556 = vmatmul.bf16.gmra.mxu0 %v226
  %v557 = vpop.f32.mrf.mxu0
  %v558 = vadd.f32 %v469, %v557
  %v559 = vpop.f32.mrf.mxu0
  %v560 = vadd.f32 %v471, %v559
  %561 = vmatmul.bf16.gmra.mxu0 %v228
  %v562 = vpop.f32.mrf.mxu0
  %v563 = vadd.f32 %v474, %v562
  %v564 = vpop.f32.mrf.mxu0
  %v565 = vadd.f32 %v476, %v564
  %566 = vdwg.mxu0
  %v567 = vadd.f32 %v229, %v488
  %v568 = vadd.f32 %v230, %v490
  %v569 = vadd.f32 %v231, %v493
  %v570 = vadd.f32 %v232, %v495
  %v571 = vadd.f32 %v233, %v498
  %v572 = vadd.f32 %v234, %v500
  %v573 = vadd.f32 %v235, %v503
  %v574 = vadd.f32 %v236, %v505
  %v575 = vadd.f32 %v237, %v508
  %v576 = vadd.f32 %v238, %v510
  %v577 = vadd.f32 %v239, %v513
  %v578 = vadd.f32 %v240, %v515
  %v579 = vadd.f32 %v241, %v518
  %v580 = vadd.f32 %v242, %v520
  %v581 = vadd.f32 %v243, %v523
  %v582 = vadd.f32 %v244, %v525
  %v583 = vadd.f32 %v245, %v528
  %v584 = vadd.f32 %v246, %v530
  %v585 = vadd.f32 %v247, %v533
  %v586 = vadd.f32 %v248, %v535
  %v587 = vadd.f32 %v249, %v538
  %v588 = vadd.f32 %v250, %v540
  %v589 = vadd.f32 %v251, %v543
  %v590 = vadd.f32 %v252, %v545
  %v591 = vadd.f32 %v253, %v548
  %v592 = vadd.f32 %v254, %v550
  %v593 = vadd.f32 %v255, %v553
  %v594 = vadd.f32 %v256, %v555
  %v595 = vadd.f32 %v257, %v558
  %v596 = vadd.f32 %v258, %v560
  %v597 = vadd.f32 %v259, %v563
  %v598 = vadd.f32 %v260, %v565
  %599 = vst [vmem:[%s4] sm:$0xff] %v567
  %600 = vst [vmem:[%s4 + $0x8] sm:$0xff] %v568
  %601 = vst [vmem:[%s4 + $0x10] sm:$0xff] %v569
  %602 = vst [vmem:[%s4 + $0x18] sm:$0xff] %v570
  %603 = vst [vmem:[%s4 + $0x20] sm:$0xff] %v571
  %604 = vst [vmem:[%s4 + $0x28] sm:$0xff] %v572
  %605 = vst [vmem:[%s4 + $0x30] sm:$0xff] %v573
  %606 = vst [vmem:[%s4 + $0x38] sm:$0xff] %v574
  %607 = vst [vmem:[%s4 + $0x40] sm:$0xff] %v575
  %608 = vst [vmem:[%s4 + $0x48] sm:$0xff] %v576
  %609 = vst [vmem:[%s4 + $0x50] sm:$0xff] %v577
  %610 = vst [vmem:[%s4 + $0x58] sm:$0xff] %v578
  %611 = vst [vmem:[%s4 + $0x60] sm:$0xff] %v579
  %612 = vst [vmem:[%s4 + $0x68] sm:$0xff] %v580
  %613 = vst [vmem:[%s4 + $0x70] sm:$0xff] %v581
  %614 = vst [vmem:[%s4 + $0x78] sm:$0xff] %v582
  %615 = vst [vmem:[%s4 + $0x80] sm:$0xff] %v583
  %616 = vst [vmem:[%s4 + $0x88] sm:$0xff] %v584
  %617 = vst [vmem:[%s4 + $0x90] sm:$0xff] %v585
  %618 = vst [vmem:[%s4 + $0x98] sm:$0xff] %v586
  %619 = vst [vmem:[%s4 + $0xa0] sm:$0xff] %v587
  %620 = vst [vmem:[%s4 + $0xa8] sm:$0xff] %v588
  %621 = vst [vmem:[%s4 + $0xb0] sm:$0xff] %v589
  %622 = vst [vmem:[%s4 + $0xb8] sm:$0xff] %v590
  %623 = vst [vmem:[%s4 + $0xc0] sm:$0xff] %v591
  %624 = vst [vmem:[%s4 + $0xc8] sm:$0xff] %v592
  %625 = vst [vmem:[%s4 + $0xd0] sm:$0xff] %v593
  %626 = vst [vmem:[%s4 + $0xd8] sm:$0xff] %v594
  %627 = vst [vmem:[%s4 + $0xe0] sm:$0xff] %v595
  %628 = vst [vmem:[%s4 + $0xe8] sm:$0xff] %v596
  %629 = vst [vmem:[%s4 + $0xf0] sm:$0xff] %v597
  %630 = vst [vmem:[%s4 + $0xf8] sm:$0xff] %v598
  // Predicated region
  $region22: #{gcn_forward.5} parent=0 // pred_check
    %p631 = pneg %p17
  $region23: #{gcn_forward.5} parent=0 // pred_check_branch
    %633 = sbr.rel (%p631) target = $region25
  $region24: #{gcn_forward.5} parent=0 // pred_region
    %v634 = vld [vmem:[%s2] sm:$0xff]
    %v635 = vld [vmem:[%s2 + $0x8] sm:$0xff]
    %v636 = vld [vmem:[%s2 + $0x10] sm:$0xff]
    %v637 = vld [vmem:[%s2 + $0x18] sm:$0xff]
    %v638 = vld [vmem:[%s2 + $0x20] sm:$0xff]
    %v639 = vld [vmem:[%s2 + $0x28] sm:$0xff]
    %v640 = vld [vmem:[%s2 + $0x30] sm:$0xff]
    %v641 = vld [vmem:[%s2 + $0x38] sm:$0xff]
    %v642 = vld [vmem:[%s2 + $0x40] sm:$0xff]
    %v643 = vld [vmem:[%s2 + $0x48] sm:$0xff]
    %v644 = vld [vmem:[%s2 + $0x50] sm:$0xff]
    %v645 = vld [vmem:[%s2 + $0x58] sm:$0xff]
    %v646 = vld [vmem:[%s2 + $0x60] sm:$0xff]
    %v647 = vld [vmem:[%s2 + $0x68] sm:$0xff]
    %v648 = vld [vmem:[%s2 + $0x70] sm:$0xff]
    %v649 = vld [vmem:[%s2 + $0x78] sm:$0xff]
    %v650 = vld [vmem:[%s2 + $0x80] sm:$0xff]
    %v651 = vld [vmem:[%s2 + $0x88] sm:$0xff]
    %v652 = vld [vmem:[%s2 + $0x90] sm:$0xff]
    %v653 = vld [vmem:[%s2 + $0x98] sm:$0xff]
    %v654 = vld [vmem:[%s2 + $0xa0] sm:$0xff]
    %v655 = vld [vmem:[%s2 + $0xa8] sm:$0xff]
    %v656 = vld [vmem:[%s2 + $0xb0] sm:$0xff]
    %v657 = vld [vmem:[%s2 + $0xb8] sm:$0xff]
    %v658 = vld [vmem:[%s2 + $0xc0] sm:$0xff]
    %v659 = vld [vmem:[%s2 + $0xc8] sm:$0xff]
    %v660 = vld [vmem:[%s2 + $0xd0] sm:$0xff]
    %v661 = vld [vmem:[%s2 + $0xd8] sm:$0xff]
    %v662 = vld [vmem:[%s2 + $0xe0] sm:$0xff]
    %v663 = vld [vmem:[%s2 + $0xe8] sm:$0xff]
    %v664 = vld [vmem:[%s2 + $0xf0] sm:$0xff]
    %v665 = vld [vmem:[%s2 + $0xf8] sm:$0xff]
    %v666 = vld [vmem:[%s4] sm:$0xff]
    %v667 = vld [vmem:[%s4 + $0x8] sm:$0xff]
    %v668 = vld [vmem:[%s4 + $0x10] sm:$0xff]
    %v669 = vld [vmem:[%s4 + $0x18] sm:$0xff]
    %v670 = vld [vmem:[%s4 + $0x20] sm:$0xff]
    %v671 = vld [vmem:[%s4 + $0x28] sm:$0xff]
    %v672 = vld [vmem:[%s4 + $0x30] sm:$0xff]
    %v673 = vld [vmem:[%s4 + $0x38] sm:$0xff]
    %v674 = vld [vmem:[%s4 + $0x40] sm:$0xff]
    %v675 = vld [vmem:[%s4 + $0x48] sm:$0xff]
    %v676 = vld [vmem:[%s4 + $0x50] sm:$0xff]
    %v677 = vld [vmem:[%s4 + $0x58] sm:$0xff]
    %v678 = vld [vmem:[%s4 + $0x60] sm:$0xff]
    %v679 = vld [vmem:[%s4 + $0x68] sm:$0xff]
    %v680 = vld [vmem:[%s4 + $0x70] sm:$0xff]
    %v681 = vld [vmem:[%s4 + $0x78] sm:$0xff]
    %v682 = vld [vmem:[%s4 + $0x80] sm:$0xff]
    %v683 = vld [vmem:[%s4 + $0x88] sm:$0xff]
    %v684 = vld [vmem:[%s4 + $0x90] sm:$0xff]
    %v685 = vld [vmem:[%s4 + $0x98] sm:$0xff]
    %v686 = vld [vmem:[%s4 + $0xa0] sm:$0xff]
    %v687 = vld [vmem:[%s4 + $0xa8] sm:$0xff]
    %v688 = vld [vmem:[%s4 + $0xb0] sm:$0xff]
    %v689 = vld [vmem:[%s4 + $0xb8] sm:$0xff]
    %v690 = vld [vmem:[%s4 + $0xc0] sm:$0xff]
    %v691 = vld [vmem:[%s4 + $0xc8] sm:$0xff]
    %v692 = vld [vmem:[%s4 + $0xd0] sm:$0xff]
    %v693 = vld [vmem:[%s4 + $0xd8] sm:$0xff]
    %v694 = vld [vmem:[%s4 + $0xe0] sm:$0xff]
    %v695 = vld [vmem:[%s4 + $0xe8] sm:$0xff]
    %v696 = vld [vmem:[%s4 + $0xf0] sm:$0xff]
    %v697 = vld [vmem:[%s4 + $0xf8] sm:$0xff]
    %699 = vset.pattern.permute.xlu0 0
    %700 = vperm.xlu0 %699, %v634
    %v701 = vpop.permute.xlu0 %700
    %704 = vset.pattern.permute.xlu0 0
    %705 = vperm.xlu0 %704, %v635
    %v706 = vpop.permute.xlu0 %705
    %709 = vset.pattern.permute.xlu0 0
    %710 = vperm.xlu0 %709, %v636
    %v711 = vpop.permute.xlu0 %710
    %714 = vset.pattern.permute.xlu0 0
    %715 = vperm.xlu0 %714, %v637
    %v716 = vpop.permute.xlu0 %715
    %719 = vset.pattern.permute.xlu0 0
    %720 = vperm.xlu0 %719, %v638
    %v721 = vpop.permute.xlu0 %720
    %724 = vset.pattern.permute.xlu0 0
    %725 = vperm.xlu0 %724, %v639
    %v726 = vpop.permute.xlu0 %725
    %729 = vset.pattern.permute.xlu0 0
    %730 = vperm.xlu0 %729, %v640
    %v731 = vpop.permute.xlu0 %730
    %734 = vset.pattern.permute.xlu0 0
    %735 = vperm.xlu0 %734, %v641
    %v736 = vpop.permute.xlu0 %735
    %739 = vset.pattern.permute.xlu0 0
    %740 = vperm.xlu0 %739, %v642
    %v741 = vpop.permute.xlu0 %740
    %744 = vset.pattern.permute.xlu0 0
    %745 = vperm.xlu0 %744, %v643
    %v746 = vpop.permute.xlu0 %745
    %749 = vset.pattern.permute.xlu0 0
    %750 = vperm.xlu0 %749, %v644
    %v751 = vpop.permute.xlu0 %750
    %754 = vset.pattern.permute.xlu0 0
    %755 = vperm.xlu0 %754, %v645
    %v756 = vpop.permute.xlu0 %755
    %759 = vset.pattern.permute.xlu0 0
    %760 = vperm.xlu0 %759, %v646
    %v761 = vpop.permute.xlu0 %760
    %764 = vset.pattern.permute.xlu0 0
    %765 = vperm.xlu0 %764, %v647
    %v766 = vpop.permute.xlu0 %765
    %769 = vset.pattern.permute.xlu0 0
    %770 = vperm.xlu0 %769, %v648
    %v771 = vpop.permute.xlu0 %770
    %774 = vset.pattern.permute.xlu0 0
    %775 = vperm.xlu0 %774, %v649
    %v776 = vpop.permute.xlu0 %775
    %779 = vset.pattern.permute.xlu0 0
    %780 = vperm.xlu0 %779, %v650
    %v781 = vpop.permute.xlu0 %780
    %784 = vset.pattern.permute.xlu0 0
    %785 = vperm.xlu0 %784, %v651
    %v786 = vpop.permute.xlu0 %785
    %789 = vset.pattern.permute.xlu0 0
    %790 = vperm.xlu0 %789, %v652
    %v791 = vpop.permute.xlu0 %790
    %794 = vset.pattern.permute.xlu0 0
    %795 = vperm.xlu0 %794, %v653
    %v796 = vpop.permute.xlu0 %795
    %799 = vset.pattern.permute.xlu0 0
    %800 = vperm.xlu0 %799, %v654
    %v801 = vpop.permute.xlu0 %800
    %804 = vset.pattern.permute.xlu0 0
    %805 = vperm.xlu0 %804, %v655
    %v806 = vpop.permute.xlu0 %805
    %809 = vset.pattern.permute.xlu0 0
    %810 = vperm.xlu0 %809, %v656
    %v811 = vpop.permute.xlu0 %810
    %814 = vset.pattern.permute.xlu0 0
    %815 = vperm.xlu0 %814, %v657
    %v816 = vpop.permute.xlu0 %815
    %819 = vset.pattern.permute.xlu0 0
    %820 = vperm.xlu0 %819, %v658
    %v821 = vpop.permute.xlu0 %820
    %824 = vset.pattern.permute.xlu0 0
    %825 = vperm.xlu0 %824, %v659
    %v826 = vpop.permute.xlu0 %825
    %829 = vset.pattern.permute.xlu0 0
    %830 = vperm.xlu0 %829, %v660
    %v831 = vpop.permute.xlu0 %830
    %834 = vset.pattern.permute.xlu0 0
    %835 = vperm.xlu0 %834, %v661
    %v836 = vpop.permute.xlu0 %835
    %839 = vset.pattern.permute.xlu0 0
    %840 = vperm.xlu0 %839, %v662
    %v841 = vpop.permute.xlu0 %840
    %844 = vset.pattern.permute.xlu0 0
    %845 = vperm.xlu0 %844, %v663
    %v846 = vpop.permute.xlu0 %845
    %849 = vset.pattern.permute.xlu0 0
    %850 = vperm.xlu0 %849, %v664
    %v851 = vpop.permute.xlu0 %850
    %854 = vset.pattern.permute.xlu0 0
    %855 = vperm.xlu0 %854, %v665
    %v856 = vpop.permute.xlu0 %855
    %v858 = vmul.f32 %v701, %v666
    %v859 = vmul.f32 %v706, %v667
    %v860 = vmul.f32 %v711, %v668
    %v861 = vmul.f32 %v716, %v669
    %v862 = vmul.f32 %v721, %v670
    %v863 = vmul.f32 %v726, %v671
    %v864 = vmul.f32 %v731, %v672
    %v865 = vmul.f32 %v736, %v673
    %v866 = vmul.f32 %v741, %v674
    %v867 = vmul.f32 %v746, %v675
    %v868 = vmul.f32 %v751, %v676
    %v869 = vmul.f32 %v756, %v677
    %v870 = vmul.f32 %v761, %v678
    %v871 = vmul.f32 %v766, %v679
    %v872 = vmul.f32 %v771, %v680
    %v873 = vmul.f32 %v776, %v681
    %v874 = vmul.f32 %v781, %v682
    %v875 = vmul.f32 %v786, %v683
    %v876 = vmul.f32 %v791, %v684
    %v877 = vmul.f32 %v796, %v685
    %v878 = vmul.f32 %v801, %v686
    %v879 = vmul.f32 %v806, %v687
    %v880 = vmul.f32 %v811, %v688
    %v881 = vmul.f32 %v816, %v689
    %v882 = vmul.f32 %v821, %v690
    %v883 = vmul.f32 %v826, %v691
    %v884 = vmul.f32 %v831, %v692
    %v885 = vmul.f32 %v836, %v693
    %v886 = vmul.f32 %v841, %v694
    %v887 = vmul.f32 %v846, %v695
    %v888 = vmul.f32 %v851, %v696
    %v889 = vmul.f32 %v856, %v697
    %v890 = vld [vmem:[%s3] sm:$0x1]
    %v892 = vperm.slane %v890, 0
    %v894 = vadd.f32 %v858, %v892
    %v895 = vadd.f32 %v859, %v892
    %v896 = vadd.f32 %v860, %v892
    %v897 = vadd.f32 %v861, %v892
    %v898 = vadd.f32 %v862, %v892
    %v899 = vadd.f32 %v863, %v892
    %v900 = vadd.f32 %v864, %v892
    %v901 = vadd.f32 %v865, %v892
    %v902 = vadd.f32 %v866, %v892
    %v903 = vadd.f32 %v867, %v892
    %v904 = vadd.f32 %v868, %v892
    %v905 = vadd.f32 %v869, %v892
    %v906 = vadd.f32 %v870, %v892
    %v907 = vadd.f32 %v871, %v892
    %v908 = vadd.f32 %v872, %v892
    %v909 = vadd.f32 %v873, %v892
    %v910 = vadd.f32 %v874, %v892
    %v911 = vadd.f32 %v875, %v892
    %v912 = vadd.f32 %v876, %v892
    %v913 = vadd.f32 %v877, %v892
    %v914 = vadd.f32 %v878, %v892
    %v915 = vadd.f32 %v879, %v892
    %v916 = vadd.f32 %v880, %v892
    %v917 = vadd.f32 %v881, %v892
    %v918 = vadd.f32 %v882, %v892
    %v919 = vadd.f32 %v883, %v892
    %v920 = vadd.f32 %v884, %v892
    %v921 = vadd.f32 %v885, %v892
    %v922 = vadd.f32 %v886, %v892
    %v923 = vadd.f32 %v887, %v892
    %v924 = vadd.f32 %v888, %v892
    %v925 = vadd.f32 %v889, %v892
    %926 = vst [vmem:[%s4] sm:$0xff] %v894
    %927 = vst [vmem:[%s4 + $0x8] sm:$0xff] %v895
    %928 = vst [vmem:[%s4 + $0x10] sm:$0xff] %v896
    %929 = vst [vmem:[%s4 + $0x18] sm:$0xff] %v897
    %930 = vst [vmem:[%s4 + $0x20] sm:$0xff] %v898
    %931 = vst [vmem:[%s4 + $0x28] sm:$0xff] %v899
    %932 = vst [vmem:[%s4 + $0x30] sm:$0xff] %v900
    %933 = vst [vmem:[%s4 + $0x38] sm:$0xff] %v901
    %934 = vst [vmem:[%s4 + $0x40] sm:$0xff] %v902
    %935 = vst [vmem:[%s4 + $0x48] sm:$0xff] %v903
    %936 = vst [vmem:[%s4 + $0x50] sm:$0xff] %v904
    %937 = vst [vmem:[%s4 + $0x58] sm:$0xff] %v905
    %938 = vst [vmem:[%s4 + $0x60] sm:$0xff] %v906
    %939 = vst [vmem:[%s4 + $0x68] sm:$0xff] %v907
    %940 = vst [vmem:[%s4 + $0x70] sm:$0xff] %v908
    %941 = vst [vmem:[%s4 + $0x78] sm:$0xff] %v909
    %942 = vst [vmem:[%s4 + $0x80] sm:$0xff] %v910
    %943 = vst [vmem:[%s4 + $0x88] sm:$0xff] %v911
    %944 = vst [vmem:[%s4 + $0x90] sm:$0xff] %v912
    %945 = vst [vmem:[%s4 + $0x98] sm:$0xff] %v913
    %946 = vst [vmem:[%s4 + $0xa0] sm:$0xff] %v914
    %947 = vst [vmem:[%s4 + $0xa8] sm:$0xff] %v915
    %948 = vst [vmem:[%s4 + $0xb0] sm:$0xff] %v916
    %949 = vst [vmem:[%s4 + $0xb8] sm:$0xff] %v917
    %950 = vst [vmem:[%s4 + $0xc0] sm:$0xff] %v918
    %951 = vst [vmem:[%s4 + $0xc8] sm:$0xff] %v919
    %952 = vst [vmem:[%s4 + $0xd0] sm:$0xff] %v920
    %953 = vst [vmem:[%s4 + $0xd8] sm:$0xff] %v921
    %954 = vst [vmem:[%s4 + $0xe0] sm:$0xff] %v922
    %955 = vst [vmem:[%s4 + $0xe8] sm:$0xff] %v923
    %956 = vst [vmem:[%s4 + $0xf0] sm:$0xff] %v924
    %957 = vst [vmem:[%s4 + $0xf8] sm:$0xff] %v925
  $region25: #{gcn_forward.5} parent=0 // pred_fallthru
    _
  // Predicated region
  $region26: #{gcn_forward.5} parent=0 // pred_check
    _
  $region27: #{gcn_forward.5} parent=0 // pred_check_branch
    %959 = sbr.rel (0) target = $region29
  $region28: #{gcn_forward.5} parent=0 // pred_region
    _
  $region29: #{gcn_forward.5} parent=0 // pred_fallthru
    _
  // Predicated region
  $region30: #{gcn_forward.5} parent=0 // pred_check
    _
  $region31: #{gcn_forward.5} parent=0 // pred_check_branch
    %961 = sbr.rel (0) target = $region33
  $region32: #{gcn_forward.5} parent=0 // pred_region
    _
  $region33: #{gcn_forward.5} parent=0 // pred_fallthru
    _

// kernel: gcn_forward.4
$region0: #{gcn_forward.4}
  #allocation0 [shape = 'u32[]', space=smem, size = 0x4, offset = 0x4, fixed_abs, tag = 'smem constant byte address 0x4 - core index']
  #allocation1 [shape = 'u32[72,128]{1,0:T(1,128)}', space=vmem, size = 0x9000, scoped, tag = 'internal scratch']
  #allocation2 [shape = 'f32[256,128]{1,0:T(8,128)}', space=vmem, size = 0x20000, scoped, tag = 'scratch operand']
  %s0 = inlined_call_operand.vmem [shape: s8[256,256], index: 0, kind: input, shape index: {}]
  %s1 = inlined_call_operand.vmem [shape: bf16[256,128], index: 1, kind: input, shape index: {}]
  %s2 = inlined_call_operand.vmem [shape: f32[256,1], index: 2, kind: input, shape index: {}]
  %s3 = inlined_call_operand.vmem [shape: f32[1,128], index: 3, kind: input, shape index: {}]
  %s4 = inlined_call_operand.vmem [shape: bf16[128,128], index: 4, kind: input, shape index: {}]
  %s5 = inlined_call_operand.vmem [shape: bf16[256,128], index: 5, kind: output, shape index: {}]
  %s6 = sld [smem:[#allocation0]]
  $region38: #{gcn_forward.4} parent=0
    _
  %s8 = ssub.s32 1, %s6
  %s9 = scalar_select 0, %s8, %s6
  // Predicated region
  $region2: #{gcn_forward.4} parent=0 // pred_check
    _
  $region3: #{gcn_forward.4} parent=0 // pred_check_branch
    %11 = sbr.rel (0) target = $region5
  $region4: #{gcn_forward.4} parent=0 // pred_region
    _
  $region5: #{gcn_forward.4} parent=0 // pred_fallthru
    _
  // Predicated region
  $region6: #{gcn_forward.4} parent=0 // pred_check
    _
  $region7: #{gcn_forward.4} parent=0 // pred_check_branch
    %13 = sbr.rel (0) target = $region9
  $region8: #{gcn_forward.4} parent=0 // pred_region
    _
  $region9: #{gcn_forward.4} parent=0 // pred_fallthru
    _
  // Predicated region
  $region10: #{gcn_forward.4} parent=0 // pred_check
    _
  $region11: #{gcn_forward.4} parent=0 // pred_check_branch
    %15 = sbr.rel (0) target = $region13
  $region12: #{gcn_forward.4} parent=0 // pred_region
    _
  $region13: #{gcn_forward.4} parent=0 // pred_fallthru
    _
  // Predicated region
  $region14: #{gcn_forward.4} parent=0 // pred_check
    _
  $region15: #{gcn_forward.4} parent=0 // pred_check_branch
    %17 = sbr.rel (0) target = $region17
  $region16: #{gcn_forward.4} parent=0 // pred_region
    _
  $region17: #{gcn_forward.4} parent=0 // pred_fallthru
    _
  // Predicated region
  $region18: #{gcn_forward.4} parent=0 // pred_check
    _
  $region19: #{gcn_forward.4} parent=0 // pred_check_branch
    %19 = sbr.rel (0) target = $region21
  $region20: #{gcn_forward.4} parent=0 // pred_region
    _
  $region21: #{gcn_forward.4} parent=0 // pred_fallthru
    _
  %p20 = scmp.eq.s32.totalorder 0, 0
  // Predicated region
  $region22: #{gcn_forward.4} parent=0 // pred_check
    %p21 = pneg %p20
  $region23: #{gcn_forward.4} parent=0 // pred_check_branch
    %23 = sbr.rel (%p21) target = $region25
  $region24: #{gcn_forward.4} parent=0 // pred_region
    %24 = vst [vmem:[#allocation2] sm:$0xff] 0.0
    %25 = vst [vmem:[#allocation2 + $0x8] sm:$0xff] 0.0
    %26 = vst [vmem:[#allocation2 + $0x10] sm:$0xff] 0.0
    %27 = vst [vmem:[#allocation2 + $0x18] sm:$0xff] 0.0
    %28 = vst [vmem:[#allocation2 + $0x20] sm:$0xff] 0.0
    %29 = vst [vmem:[#allocation2 + $0x28] sm:$0xff] 0.0
    %30 = vst [vmem:[#allocation2 + $0x30] sm:$0xff] 0.0
    %31 = vst [vmem:[#allocation2 + $0x38] sm:$0xff] 0.0
    %32 = vst [vmem:[#allocation2 + $0x40] sm:$0xff] 0.0
    %33 = vst [vmem:[#allocation2 + $0x48] sm:$0xff] 0.0
    %34 = vst [vmem:[#allocation2 + $0x50] sm:$0xff] 0.0
    %35 = vst [vmem:[#allocation2 + $0x58] sm:$0xff] 0.0
    %36 = vst [vmem:[#allocation2 + $0x60] sm:$0xff] 0.0
    %37 = vst [vmem:[#allocation2 + $0x68] sm:$0xff] 0.0
    %38 = vst [vmem:[#allocation2 + $0x70] sm:$0xff] 0.0
    %39 = vst [vmem:[#allocation2 + $0x78] sm:$0xff] 0.0
    %40 = vst [vmem:[#allocation2 + $0x80] sm:$0xff] 0.0
    %41 = vst [vmem:[#allocation2 + $0x88] sm:$0xff] 0.0
    %42 = vst [vmem:[#allocation2 + $0x90] sm:$0xff] 0.0
    %43 = vst [vmem:[#allocation2 + $0x98] sm:$0xff] 0.0
    %44 = vst [vmem:[#allocation2 + $0xa0] sm:$0xff] 0.0
    %45 = vst [vmem:[#allocation2 + $0xa8] sm:$0xff] 0.0
    %46 = vst [vmem:[#allocation2 + $0xb0] sm:$0xff] 0.0
    %47 = vst [vmem:[#allocation2 + $0xb8] sm:$0xff] 0.0
    %48 = vst [vmem:[#allocation2 + $0xc0] sm:$0xff] 0.0
    %49 = vst [vmem:[#allocation2 + $0xc8] sm:$0xff] 0.0
    %50 = vst [vmem:[#allocation2 + $0xd0] sm:$0xff] 0.0
    %51 = vst [vmem:[#allocation2 + $0xd8] sm:$0xff] 0.0
    %52 = vst [vmem:[#allocation2 + $0xe0] sm:$0xff] 0.0
    %53 = vst [vmem:[#allocation2 + $0xe8] sm:$0xff] 0.0
    %54 = vst [vmem:[#allocation2 + $0xf0] sm:$0xff] 0.0
    %55 = vst [vmem:[#allocation2 + $0xf8] sm:$0xff] 0.0
  $region25: #{gcn_forward.4} parent=0 // pred_fallthru
    _
  %v56 = vld [vmem:[%s0] sm:$0xff]
  %v57 = vld [vmem:[%s0 + $0x8] sm:$0xff]
  %v58 = vld [vmem:[%s0 + $0x10] sm:$0xff]
  %v59 = vld [vmem:[%s0 + $0x18] sm:$0xff]
  %v60 = vld [vmem:[%s0 + $0x20] sm:$0xff]
  %v61 = vld [vmem:[%s0 + $0x28] sm:$0xff]
  %v62 = vld [vmem:[%s0 + $0x30] sm:$0xff]
  %v63 = vld [vmem:[%s0 + $0x38] sm:$0xff]
  %v64 = vld [vmem:[%s0 + $0x40] sm:$0xff]
  %v65 = vld [vmem:[%s0 + $0x48] sm:$0xff]
  %v66 = vld [vmem:[%s0 + $0x50] sm:$0xff]
  %v67 = vld [vmem:[%s0 + $0x58] sm:$0xff]
  %v68 = vld [vmem:[%s0 + $0x60] sm:$0xff]
  %v69 = vld [vmem:[%s0 + $0x68] sm:$0xff]
  %v70 = vld [vmem:[%s0 + $0x70] sm:$0xff]
  %v71 = vld [vmem:[%s0 + $0x78] sm:$0xff]
  %v72 = vunpack.c.0.s8 %v56
  %v73 = vunpack.c.0.s8 %v57
  %v74 = vunpack.c.1.s8 %v56
  %v75 = vunpack.c.1.s8 %v57
  %v76 = vunpack.c.2.s8 %v56
  %v77 = vunpack.c.2.s8 %v57
  %v78 = vunpack.c.3.s8 %v56
  %v79 = vunpack.c.3.s8 %v57
  %v80 = vunpack.c.0.s8 %v58
  %v81 = vunpack.c.0.s8 %v59
  %v82 = vunpack.c.1.s8 %v58
  %v83 = vunpack.c.1.s8 %v59
  %v84 = vunpack.c.2.s8 %v58
  %v85 = vunpack.c.2.s8 %v59
  %v86 = vunpack.c.3.s8 %v58
  %v87 = vunpack.c.3.s8 %v59
  %v88 = vunpack.c.0.s8 %v60
  %v89 = vunpack.c.0.s8 %v61
  %v90 = vunpack.c.1.s8 %v60
  %v91 = vunpack.c.1.s8 %v61
  %v92 = vunpack.c.2.s8 %v60
  %v93 = vunpack.c.2.s8 %v61
  %v94 = vunpack.c.3.s8 %v60
  %v95 = vunpack.c.3.s8 %v61
  %v96 = vunpack.c.0.s8 %v62
  %v97 = vunpack.c.0.s8 %v63
  %v98 = vunpack.c.1.s8 %v62
  %v99 = vunpack.c.1.s8 %v63
  %v100 = vunpack.c.2.s8 %v62
  %v101 = vunpack.c.2.s8 %v63
  %v102 = vunpack.c.3.s8 %v62
  %v103 = vunpack.c.3.s8 %v63
  %v104 = vunpack.c.0.s8 %v64
  %v105 = vunpack.c.0.s8 %v65
  %v106 = vunpack.c.1.s8 %v64
  %v107 = vunpack.c.1.s8 %v65
  %v108 = vunpack.c.2.s8 %v64
  %v109 = vunpack.c.2.s8 %v65
  %v110 = vunpack.c.3.s8 %v64
  %v111 = vunpack.c.3.s8 %v65
  %v112 = vunpack.c.0.s8 %v66
  %v113 = vunpack.c.0.s8 %v67
  %v114 = vunpack.c.1.s8 %v66
  %v115 = vunpack.c.1.s8 %v67
  %v116 = vunpack.c.2.s8 %v66
  %v117 = vunpack.c.2.s8 %v67
  %v118 = vunpack.c.3.s8 %v66
  %v119 = vunpack.c.3.s8 %v67
  %v120 = vunpack.c.0.s8 %v68
  %v121 = vunpack.c.0.s8 %v69
  %v122 = vunpack.c.1.s8 %v68
  %v123 = vunpack.c.1.s8 %v69
  %v124 = vunpack.c.2.s8 %v68
  %v125 = vunpack.c.2.s8 %v69
  %v126 = vunpack.c.3.s8 %v68
  %v127 = vunpack.c.3.s8 %v69
  %v128 = vunpack.c.0.s8 %v70
  %v129 = vunpack.c.0.s8 %v71
  %v130 = vunpack.c.1.s8 %v70
  %v131 = vunpack.c.1.s8 %v71
  %v132 = vunpack.c.2.s8 %v70
  %v133 = vunpack.c.2.s8 %v71
  %v134 = vunpack.c.3.s8 %v70
  %v135 = vunpack.c.3.s8 %v71
  %v136 = vcvt.s32.f32 %v72
  %v137 = vcvt.s32.f32 %v73
  %v138 = vcvt.s32.f32 %v74
  %v139 = vcvt.s32.f32 %v75
  %v140 = vcvt.s32.f32 %v76
  %v141 = vcvt.s32.f32 %v77
  %v142 = vcvt.s32.f32 %v78
  %v143 = vcvt.s32.f32 %v79
  %v144 = vcvt.s32.f32 %v80
  %v145 = vcvt.s32.f32 %v81
  %v146 = vcvt.s32.f32 %v82
  %v147 = vcvt.s32.f32 %v83
  %v148 = vcvt.s32.f32 %v84
  %v149 = vcvt.s32.f32 %v85
  %v150 = vcvt.s32.f32 %v86
  %v151 = vcvt.s32.f32 %v87
  %v152 = vcvt.s32.f32 %v88
  %v153 = vcvt.s32.f32 %v89
  %v154 = vcvt.s32.f32 %v90
  %v155 = vcvt.s32.f32 %v91
  %v156 = vcvt.s32.f32 %v92
  %v157 = vcvt.s32.f32 %v93
  %v158 = vcvt.s32.f32 %v94
  %v159 = vcvt.s32.f32 %v95
  %v160 = vcvt.s32.f32 %v96
  %v161 = vcvt.s32.f32 %v97
  %v162 = vcvt.s32.f32 %v98
  %v163 = vcvt.s32.f32 %v99
  %v164 = vcvt.s32.f32 %v100
  %v165 = vcvt.s32.f32 %v101
  %v166 = vcvt.s32.f32 %v102
  %v167 = vcvt.s32.f32 %v103
  %v168 = vcvt.s32.f32 %v104
  %v169 = vcvt.s32.f32 %v105
  %v170 = vcvt.s32.f32 %v106
  %v171 = vcvt.s32.f32 %v107
  %v172 = vcvt.s32.f32 %v108
  %v173 = vcvt.s32.f32 %v109
  %v174 = vcvt.s32.f32 %v110
  %v175 = vcvt.s32.f32 %v111
  %v176 = vcvt.s32.f32 %v112
  %v177 = vcvt.s32.f32 %v113
  %v178 = vcvt.s32.f32 %v114
  %v179 = vcvt.s32.f32 %v115
  %v180 = vcvt.s32.f32 %v116
  %v181 = vcvt.s32.f32 %v117
  %v182 = vcvt.s32.f32 %v118
  %v183 = vcvt.s32.f32 %v119
  %v184 = vcvt.s32.f32 %v120
  %v185 = vcvt.s32.f32 %v121
  %v186 = vcvt.s32.f32 %v122
  %v187 = vcvt.s32.f32 %v123
  %v188 = vcvt.s32.f32 %v124
  %v189 = vcvt.s32.f32 %v125
  %v190 = vcvt.s32.f32 %v126
  %v191 = vcvt.s32.f32 %v127
  %v192 = vcvt.s32.f32 %v128
  %v193 = vcvt.s32.f32 %v129
  %v194 = vcvt.s32.f32 %v130
  %v195 = vcvt.s32.f32 %v131
  %v196 = vcvt.s32.f32 %v132
  %v197 = vcvt.s32.f32 %v133
  %v198 = vcvt.s32.f32 %v134
  %v199 = vcvt.s32.f32 %v135
  %v200 = vpack.c.bf16 %v138, %v136
  %v201 = vpack.c.bf16 %v139, %v137
  %v202 = vpack.c.bf16 %v142, %v140
  %v203 = vpack.c.bf16 %v143, %v141
  %v204 = vpack.c.bf16 %v146, %v144
  %v205 = vpack.c.bf16 %v147, %v145
  %v206 = vpack.c.bf16 %v150, %v148
  %v207 = vpack.c.bf16 %v151, %v149
  %v208 = vpack.c.bf16 %v154, %v152
  %v209 = vpack.c.bf16 %v155, %v153
  %v210 = vpack.c.bf16 %v158, %v156
  %v211 = vpack.c.bf16 %v159, %v157
  %v212 = vpack.c.bf16 %v162, %v160
  %v213 = vpack.c.bf16 %v163, %v161
  %v214 = vpack.c.bf16 %v166, %v164
  %v215 = vpack.c.bf16 %v167, %v165
  %v216 = vpack.c.bf16 %v170, %v168
  %v217 = vpack.c.bf16 %v171, %v169
  %v218 = vpack.c.bf16 %v174, %v172
  %v219 = vpack.c.bf16 %v175, %v173
  %v220 = vpack.c.bf16 %v178, %v176
  %v221 = vpack.c.bf16 %v179, %v177
  %v222 = vpack.c.bf16 %v182, %v180
  %v223 = vpack.c.bf16 %v183, %v181
  %v224 = vpack.c.bf16 %v186, %v184
  %v225 = vpack.c.bf16 %v187, %v185
  %v226 = vpack.c.bf16 %v190, %v188
  %v227 = vpack.c.bf16 %v191, %v189
  %v228 = vpack.c.bf16 %v194, %v192
  %v229 = vpack.c.bf16 %v195, %v193
  %v230 = vpack.c.bf16 %v198, %v196
  %v231 = vpack.c.bf16 %v199, %v197
  %v232 = vld [vmem:[#allocation2] sm:$0xff]
  %v233 = vld [vmem:[#allocation2 + $0x8] sm:$0xff]
  %v234 = vld [vmem:[#allocation2 + $0x10] sm:$0xff]
  %v235 = vld [vmem:[#allocation2 + $0x18] sm:$0xff]
  %v236 = vld [vmem:[#allocation2 + $0x20] sm:$0xff]
  %v237 = vld [vmem:[#allocation2 + $0x28] sm:$0xff]
  %v238 = vld [vmem:[#allocation2 + $0x30] sm:$0xff]
  %v239 = vld [vmem:[#allocation2 + $0x38] sm:$0xff]
  %v240 = vld [vmem:[#allocation2 + $0x40] sm:$0xff]
  %v241 = vld [vmem:[#allocation2 + $0x48] sm:$0xff]
  %v242 = vld [vmem:[#allocation2 + $0x50] sm:$0xff]
  %v243 = vld [vmem:[#allocation2 + $0x58] sm:$0xff]
  %v244 = vld [vmem:[#allocation2 + $0x60] sm:$0xff]
  %v245 = vld [vmem:[#allocation2 + $0x68] sm:$0xff]
  %v246 = vld [vmem:[#allocation2 + $0x70] sm:$0xff]
  %v247 = vld [vmem:[#allocation2 + $0x78] sm:$0xff]
  %v248 = vld [vmem:[#allocation2 + $0x80] sm:$0xff]
  %v249 = vld [vmem:[#allocation2 + $0x88] sm:$0xff]
  %v250 = vld [vmem:[#allocation2 + $0x90] sm:$0xff]
  %v251 = vld [vmem:[#allocation2 + $0x98] sm:$0xff]
  %v252 = vld [vmem:[#allocation2 + $0xa0] sm:$0xff]
  %v253 = vld [vmem:[#allocation2 + $0xa8] sm:$0xff]
  %v254 = vld [vmem:[#allocation2 + $0xb0] sm:$0xff]
  %v255 = vld [vmem:[#allocation2 + $0xb8] sm:$0xff]
  %v256 = vld [vmem:[#allocation2 + $0xc0] sm:$0xff]
  %v257 = vld [vmem:[#allocation2 + $0xc8] sm:$0xff]
  %v258 = vld [vmem:[#allocation2 + $0xd0] sm:$0xff]
  %v259 = vld [vmem:[#allocation2 + $0xd8] sm:$0xff]
  %v260 = vld [vmem:[#allocation2 + $0xe0] sm:$0xff]
  %v261 = vld [vmem:[#allocation2 + $0xe8] sm:$0xff]
  %v262 = vld [vmem:[#allocation2 + $0xf0] sm:$0xff]
  %v263 = vld [vmem:[#allocation2 + $0xf8] sm:$0xff]
  %v264 = vld [vmem:[%s1] sm:$0xf]
  %v265 = vld [vmem:[%s1 + $0x4] sm:$0xf]
  %v266 = vld [vmem:[%s1 + $0x8] sm:$0xf]
  %v267 = vld [vmem:[%s1 + $0xc] sm:$0xf]
  %v268 = vld [vmem:[%s1 + $0x10] sm:$0xf]
  %v269 = vld [vmem:[%s1 + $0x14] sm:$0xf]
  %v270 = vld [vmem:[%s1 + $0x18] sm:$0xf]
  %v271 = vld [vmem:[%s1 + $0x1c] sm:$0xf]
  %v272 = vld [vmem:[%s1 + $0x20] sm:$0xf]
  %v273 = vld [vmem:[%s1 + $0x24] sm:$0xf]
  %v274 = vld [vmem:[%s1 + $0x28] sm:$0xf]
  %v275 = vld [vmem:[%s1 + $0x2c] sm:$0xf]
  %v276 = vld [vmem:[%s1 + $0x30] sm:$0xf]
  %v277 = vld [vmem:[%s1 + $0x34] sm:$0xf]
  %v278 = vld [vmem:[%s1 + $0x38] sm:$0xf]
  %v279 = vld [vmem:[%s1 + $0x3c] sm:$0xf]
  %v280 = vld [vmem:[%s1 + $0x40] sm:$0xf]
  %v281 = vld [vmem:[%s1 + $0x44] sm:$0xf]
  %v282 = vld [vmem:[%s1 + $0x48] sm:$0xf]
  %v283 = vld [vmem:[%s1 + $0x4c] sm:$0xf]
  %v284 = vld [vmem:[%s1 + $0x50] sm:$0xf]
  %v285 = vld [vmem:[%s1 + $0x54] sm:$0xf]
  %v286 = vld [vmem:[%s1 + $0x58] sm:$0xf]
  %v287 = vld [vmem:[%s1 + $0x5c] sm:$0xf]
  %v288 = vld [vmem:[%s1 + $0x60] sm:$0xf]
  %v289 = vld [vmem:[%s1 + $0x64] sm:$0xf]
  %v290 = vld [vmem:[%s1 + $0x68] sm:$0xf]
  %v291 = vld [vmem:[%s1 + $0x6c] sm:$0xf]
  %v292 = vld [vmem:[%s1 + $0x70] sm:$0xf]
  %v293 = vld [vmem:[%s1 + $0x74] sm:$0xf]
  %v294 = vld [vmem:[%s1 + $0x78] sm:$0xf]
  %v295 = vld [vmem:[%s1 + $0x7c] sm:$0xf]
  %v328 = vunpack.c.l.b16 %v264
  %v329 = vunpack.c.l.b16 %v265
  %v330 = vunpack.c.l.b16 %v266
  %v331 = vunpack.c.l.b16 %v267
  %v332 = vunpack.c.l.b16 %v268
  %v333 = vunpack.c.l.b16 %v269
  %v334 = vunpack.c.l.b16 %v270
  %v335 = vunpack.c.l.b16 %v271
  %v336 = vunpack.c.l.b16 %v272
  %v337 = vunpack.c.l.b16 %v273
  %v338 = vunpack.c.l.b16 %v274
  %v339 = vunpack.c.l.b16 %v275
  %v340 = vunpack.c.l.b16 %v276
  %v341 = vunpack.c.l.b16 %v277
  %v342 = vunpack.c.l.b16 %v278
  %v343 = vunpack.c.l.b16 %v279
  %v344 = vunpack.c.l.b16 %v280
  %v345 = vunpack.c.l.b16 %v281
  %v346 = vunpack.c.l.b16 %v282
  %v347 = vunpack.c.l.b16 %v283
  %v348 = vunpack.c.l.b16 %v284
  %v349 = vunpack.c.l.b16 %v285
  %v350 = vunpack.c.l.b16 %v286
  %v351 = vunpack.c.l.b16 %v287
  %v352 = vunpack.c.l.b16 %v288
  %v353 = vunpack.c.l.b16 %v289
  %v354 = vunpack.c.l.b16 %v290
  %v355 = vunpack.c.l.b16 %v291
  %v356 = vunpack.c.l.b16 %v292
  %v357 = vunpack.c.l.b16 %v293
  %v358 = vunpack.c.l.b16 %v294
  %v359 = vunpack.c.l.b16 %v295
  %v360 = vpack.c.b16 %v329, %v328
  %v361 = vpack.c.b16 %v331, %v330
  %v362 = vpack.c.b16 %v333, %v332
  %v363 = vpack.c.b16 %v335, %v334
  %v364 = vpack.c.b16 %v337, %v336
  %v365 = vpack.c.b16 %v339, %v338
  %v366 = vpack.c.b16 %v341, %v340
  %v367 = vpack.c.b16 %v343, %v342
  %v368 = vpack.c.b16 %v345, %v344
  %v369 = vpack.c.b16 %v347, %v346
  %v370 = vpack.c.b16 %v349, %v348
  %v371 = vpack.c.b16 %v351, %v350
  %v372 = vpack.c.b16 %v353, %v352
  %v373 = vpack.c.b16 %v355, %v354
  %v374 = vpack.c.b16 %v357, %v356
  %v375 = vpack.c.b16 %v359, %v358
  %392 = vmatpush.bf16.msra.mxu0 %v367
  %393 = vmatpush.bf16.msra.mxu0 %v366
  %394 = vmatpush.bf16.msra.mxu0 %v365
  %395 = vmatpush.bf16.msra.mxu0 %v364
  %396 = vmatpush.bf16.msra.mxu0 %v363
  %397 = vmatpush.bf16.msra.mxu0 %v362
  %398 = vmatpush.bf16.msra.mxu0 %v361
  %399 = vmatpush.bf16.msra.mxu0 %v360
  %400 = vmatmul.bf16.gmra.mxu0 %v200
  %v401 = vpop.f32.mrf.mxu0
  %v402 = vadd.f32 0.0, %v401
  %v403 = vpop.f32.mrf.mxu0
  %v404 = vadd.f32 0.0, %v403
  %405 = vmatmul.bf16.gmra.mxu0 %v202
  %v406 = vpop.f32.mrf.mxu0
  %v407 = vadd.f32 0.0, %v406
  %v408 = vpop.f32.mrf.mxu0
  %v409 = vadd.f32 0.0, %v408
  %410 = vmatmul.bf16.gmra.mxu0 %v204
  %v411 = vpop.f32.mrf.mxu0
  %v412 = vadd.f32 0.0, %v411
  %v413 = vpop.f32.mrf.mxu0
  %v414 = vadd.f32 0.0, %v413
  %415 = vmatmul.bf16.gmra.mxu0 %v206
  %v416 = vpop.f32.mrf.mxu0
  %v417 = vadd.f32 0.0, %v416
  %v418 = vpop.f32.mrf.mxu0
  %v419 = vadd.f32 0.0, %v418
  %420 = vmatmul.bf16.gmra.mxu0 %v208
  %v421 = vpop.f32.mrf.mxu0
  %v422 = vadd.f32 0.0, %v421
  %v423 = vpop.f32.mrf.mxu0
  %v424 = vadd.f32 0.0, %v423
  %425 = vmatmul.bf16.gmra.mxu0 %v210
  %v426 = vpop.f32.mrf.mxu0
  %v427 = vadd.f32 0.0, %v426
  %v428 = vpop.f32.mrf.mxu0
  %v429 = vadd.f32 0.0, %v428
  %430 = vmatmul.bf16.gmra.mxu0 %v212
  %v431 = vpop.f32.mrf.mxu0
  %v432 = vadd.f32 0.0, %v431
  %v433 = vpop.f32.mrf.mxu0
  %v434 = vadd.f32 0.0, %v433
  %435 = vmatmul.bf16.gmra.mxu0 %v214
  %v436 = vpop.f32.mrf.mxu0
  %v437 = vadd.f32 0.0, %v436
  %v438 = vpop.f32.mrf.mxu0
  %v439 = vadd.f32 0.0, %v438
  %440 = vmatmul.bf16.gmra.mxu0 %v216
  %v441 = vpop.f32.mrf.mxu0
  %v442 = vadd.f32 0.0, %v441
  %v443 = vpop.f32.mrf.mxu0
  %v444 = vadd.f32 0.0, %v443
  %445 = vmatmul.bf16.gmra.mxu0 %v218
  %v446 = vpop.f32.mrf.mxu0
  %v447 = vadd.f32 0.0, %v446
  %v448 = vpop.f32.mrf.mxu0
  %v449 = vadd.f32 0.0, %v448
  %450 = vmatmul.bf16.gmra.mxu0 %v220
  %v451 = vpop.f32.mrf.mxu0
  %v452 = vadd.f32 0.0, %v451
  %v453 = vpop.f32.mrf.mxu0
  %v454 = vadd.f32 0.0, %v453
  %455 = vmatmul.bf16.gmra.mxu0 %v222
  %v456 = vpop.f32.mrf.mxu0
  %v457 = vadd.f32 0.0, %v456
  %v458 = vpop.f32.mrf.mxu0
  %v459 = vadd.f32 0.0, %v458
  %460 = vmatmul.bf16.gmra.mxu0 %v224
  %v461 = vpop.f32.mrf.mxu0
  %v462 = vadd.f32 0.0, %v461
  %v463 = vpop.f32.mrf.mxu0
  %v464 = vadd.f32 0.0, %v463
  %465 = vmatmul.bf16.gmra.mxu0 %v226
  %v466 = vpop.f32.mrf.mxu0
  %v467 = vadd.f32 0.0, %v466
  %v468 = vpop.f32.mrf.mxu0
  %v469 = vadd.f32 0.0, %v468
  %470 = vmatmul.bf16.gmra.mxu0 %v228
  %v471 = vpop.f32.mrf.mxu0
  %v472 = vadd.f32 0.0, %v471
  %v473 = vpop.f32.mrf.mxu0
  %v474 = vadd.f32 0.0, %v473
  %475 = vmatmul.bf16.gmra.mxu0 %v230
  %v476 = vpop.f32.mrf.mxu0
  %v477 = vadd.f32 0.0, %v476
  %v478 = vpop.f32.mrf.mxu0
  %v479 = vadd.f32 0.0, %v478
  %480 = vdwg.mxu0
  %481 = vmatpush.bf16.msra.mxu0 %v375
  %482 = vmatpush.bf16.msra.mxu0 %v374
  %483 = vmatpush.bf16.msra.mxu0 %v373
  %484 = vmatpush.bf16.msra.mxu0 %v372
  %485 = vmatpush.bf16.msra.mxu0 %v371
  %486 = vmatpush.bf16.msra.mxu0 %v370
  %487 = vmatpush.bf16.msra.mxu0 %v369
  %488 = vmatpush.bf16.msra.mxu0 %v368
  %489 = vmatmul.bf16.gmra.mxu0 %v201
  %v490 = vpop.f32.mrf.mxu0
  %v491 = vadd.f32 %v402, %v490
  %v492 = vpop.f32.mrf.mxu0
  %v493 = vadd.f32 %v404, %v492
  %494 = vmatmul.bf16.gmra.mxu0 %v203
  %v495 = vpop.f32.mrf.mxu0
  %v496 = vadd.f32 %v407, %v495
  %v497 = vpop.f32.mrf.mxu0
  %v498 = vadd.f32 %v409, %v497
  %499 = vmatmul.bf16.gmra.mxu0 %v205
  %v500 = vpop.f32.mrf.mxu0
  %v501 = vadd.f32 %v412, %v500
  %v502 = vpop.f32.mrf.mxu0
  %v503 = vadd.f32 %v414, %v502
  %504 = vmatmul.bf16.gmra.mxu0 %v207
  %v505 = vpop.f32.mrf.mxu0
  %v506 = vadd.f32 %v417, %v505
  %v507 = vpop.f32.mrf.mxu0
  %v508 = vadd.f32 %v419, %v507
  %509 = vmatmul.bf16.gmra.mxu0 %v209
  %v510 = vpop.f32.mrf.mxu0
  %v511 = vadd.f32 %v422, %v510
  %v512 = vpop.f32.mrf.mxu0
  %v513 = vadd.f32 %v424, %v512
  %514 = vmatmul.bf16.gmra.mxu0 %v211
  %v515 = vpop.f32.mrf.mxu0
  %v516 = vadd.f32 %v427, %v515
  %v517 = vpop.f32.mrf.mxu0
  %v518 = vadd.f32 %v429, %v517
  %519 = vmatmul.bf16.gmra.mxu0 %v213
  %v520 = vpop.f32.mrf.mxu0
  %v521 = vadd.f32 %v432, %v520
  %v522 = vpop.f32.mrf.mxu0
  %v523 = vadd.f32 %v434, %v522
  %524 = vmatmul.bf16.gmra.mxu0 %v215
  %v525 = vpop.f32.mrf.mxu0
  %v526 = vadd.f32 %v437, %v525
  %v527 = vpop.f32.mrf.mxu0
  %v528 = vadd.f32 %v439, %v527
  %529 = vmatmul.bf16.gmra.mxu0 %v217
  %v530 = vpop.f32.mrf.mxu0
  %v531 = vadd.f32 %v442, %v530
  %v532 = vpop.f32.mrf.mxu0
  %v533 = vadd.f32 %v444, %v532
  %534 = vmatmul.bf16.gmra.mxu0 %v219
  %v535 = vpop.f32.mrf.mxu0
  %v536 = vadd.f32 %v447, %v535
  %v537 = vpop.f32.mrf.mxu0
  %v538 = vadd.f32 %v449, %v537
  %539 = vmatmul.bf16.gmra.mxu0 %v221
  %v540 = vpop.f32.mrf.mxu0
  %v541 = vadd.f32 %v452, %v540
  %v542 = vpop.f32.mrf.mxu0
  %v543 = vadd.f32 %v454, %v542
  %544 = vmatmul.bf16.gmra.mxu0 %v223
  %v545 = vpop.f32.mrf.mxu0
  %v546 = vadd.f32 %v457, %v545
  %v547 = vpop.f32.mrf.mxu0
  %v548 = vadd.f32 %v459, %v547
  %549 = vmatmul.bf16.gmra.mxu0 %v225
  %v550 = vpop.f32.mrf.mxu0
  %v551 = vadd.f32 %v462, %v550
  %v552 = vpop.f32.mrf.mxu0
  %v553 = vadd.f32 %v464, %v552
  %554 = vmatmul.bf16.gmra.mxu0 %v227
  %v555 = vpop.f32.mrf.mxu0
  %v556 = vadd.f32 %v467, %v555
  %v557 = vpop.f32.mrf.mxu0
  %v558 = vadd.f32 %v469, %v557
  %559 = vmatmul.bf16.gmra.mxu0 %v229
  %v560 = vpop.f32.mrf.mxu0
  %v561 = vadd.f32 %v472, %v560
  %v562 = vpop.f32.mrf.mxu0
  %v563 = vadd.f32 %v474, %v562
  %564 = vmatmul.bf16.gmra.mxu0 %v231
  %v565 = vpop.f32.mrf.mxu0
  %v566 = vadd.f32 %v477, %v565
  %v567 = vpop.f32.mrf.mxu0
  %v568 = vadd.f32 %v479, %v567
  %569 = vdwg.mxu0
  %v570 = vadd.f32 %v232, %v491
  %v571 = vadd.f32 %v233, %v493
  %v572 = vadd.f32 %v234, %v496
  %v573 = vadd.f32 %v235, %v498
  %v574 = vadd.f32 %v236, %v501
  %v575 = vadd.f32 %v237, %v503
  %v576 = vadd.f32 %v238, %v506
  %v577 = vadd.f32 %v239, %v508
  %v578 = vadd.f32 %v240, %v511
  %v579 = vadd.f32 %v241, %v513
  %v580 = vadd.f32 %v242, %v516
  %v581 = vadd.f32 %v243, %v518
  %v582 = vadd.f32 %v244, %v521
  %v583 = vadd.f32 %v245, %v523
  %v584 = vadd.f32 %v246, %v526
  %v585 = vadd.f32 %v247, %v528
  %v586 = vadd.f32 %v248, %v531
  %v587 = vadd.f32 %v249, %v533
  %v588 = vadd.f32 %v250, %v536
  %v589 = vadd.f32 %v251, %v538
  %v590 = vadd.f32 %v252, %v541
  %v591 = vadd.f32 %v253, %v543
  %v592 = vadd.f32 %v254, %v546
  %v593 = vadd.f32 %v255, %v548
  %v594 = vadd.f32 %v256, %v551
  %v595 = vadd.f32 %v257, %v553
  %v596 = vadd.f32 %v258, %v556
  %v597 = vadd.f32 %v259, %v558
  %v598 = vadd.f32 %v260, %v561
  %v599 = vadd.f32 %v261, %v563
  %v600 = vadd.f32 %v262, %v566
  %v601 = vadd.f32 %v263, %v568
  %602 = vst [vmem:[#allocation2] sm:$0xff] %v570
  %603 = vst [vmem:[#allocation2 + $0x8] sm:$0xff] %v571
  %604 = vst [vmem:[#allocation2 + $0x10] sm:$0xff] %v572
  %605 = vst [vmem:[#allocation2 + $0x18] sm:$0xff] %v573
  %606 = vst [vmem:[#allocation2 + $0x20] sm:$0xff] %v574
  %607 = vst [vmem:[#allocation2 + $0x28] sm:$0xff] %v575
  %608 = vst [vmem:[#allocation2 + $0x30] sm:$0xff] %v576
  %609 = vst [vmem:[#allocation2 + $0x38] sm:$0xff] %v577
  %610 = vst [vmem:[#allocation2 + $0x40] sm:$0xff] %v578
  %611 = vst [vmem:[#allocation2 + $0x48] sm:$0xff] %v579
  %612 = vst [vmem:[#allocation2 + $0x50] sm:$0xff] %v580
  %613 = vst [vmem:[#allocation2 + $0x58] sm:$0xff] %v581
  %614 = vst [vmem:[#allocation2 + $0x60] sm:$0xff] %v582
  %615 = vst [vmem:[#allocation2 + $0x68] sm:$0xff] %v583
  %616 = vst [vmem:[#allocation2 + $0x70] sm:$0xff] %v584
  %617 = vst [vmem:[#allocation2 + $0x78] sm:$0xff] %v585
  %618 = vst [vmem:[#allocation2 + $0x80] sm:$0xff] %v586
  %619 = vst [vmem:[#allocation2 + $0x88] sm:$0xff] %v587
  %620 = vst [vmem:[#allocation2 + $0x90] sm:$0xff] %v588
  %621 = vst [vmem:[#allocation2 + $0x98] sm:$0xff] %v589
  %622 = vst [vmem:[#allocation2 + $0xa0] sm:$0xff] %v590
  %623 = vst [vmem:[#allocation2 + $0xa8] sm:$0xff] %v591
  %624 = vst [vmem:[#allocation2 + $0xb0] sm:$0xff] %v592
  %625 = vst [vmem:[#allocation2 + $0xb8] sm:$0xff] %v593
  %626 = vst [vmem:[#allocation2 + $0xc0] sm:$0xff] %v594
  %627 = vst [vmem:[#allocation2 + $0xc8] sm:$0xff] %v595
  %628 = vst [vmem:[#allocation2 + $0xd0] sm:$0xff] %v596
  %629 = vst [vmem:[#allocation2 + $0xd8] sm:$0xff] %v597
  %630 = vst [vmem:[#allocation2 + $0xe0] sm:$0xff] %v598
  %631 = vst [vmem:[#allocation2 + $0xe8] sm:$0xff] %v599
  %632 = vst [vmem:[#allocation2 + $0xf0] sm:$0xff] %v600
  %633 = vst [vmem:[#allocation2 + $0xf8] sm:$0xff] %v601
  // Predicated region
  $region26: #{gcn_forward.4} parent=0 // pred_check
    %p634 = pneg %p20
  $region27: #{gcn_forward.4} parent=0 // pred_check_branch
    %636 = sbr.rel (%p634) target = $region29
  $region28: #{gcn_forward.4} parent=0 // pred_region
    %v637 = vld [vmem:[%s2] sm:$0xff]
    %v638 = vld [vmem:[%s2 + $0x8] sm:$0xff]
    %v639 = vld [vmem:[%s2 + $0x10] sm:$0xff]
    %v640 = vld [vmem:[%s2 + $0x18] sm:$0xff]
    %v641 = vld [vmem:[%s2 + $0x20] sm:$0xff]
    %v642 = vld [vmem:[%s2 + $0x28] sm:$0xff]
    %v643 = vld [vmem:[%s2 + $0x30] sm:$0xff]
    %v644 = vld [vmem:[%s2 + $0x38] sm:$0xff]
    %v645 = vld [vmem:[%s2 + $0x40] sm:$0xff]
    %v646 = vld [vmem:[%s2 + $0x48] sm:$0xff]
    %v647 = vld [vmem:[%s2 + $0x50] sm:$0xff]
    %v648 = vld [vmem:[%s2 + $0x58] sm:$0xff]
    %v649 = vld [vmem:[%s2 + $0x60] sm:$0xff]
    %v650 = vld [vmem:[%s2 + $0x68] sm:$0xff]
    %v651 = vld [vmem:[%s2 + $0x70] sm:$0xff]
    %v652 = vld [vmem:[%s2 + $0x78] sm:$0xff]
    %v653 = vld [vmem:[%s2 + $0x80] sm:$0xff]
    %v654 = vld [vmem:[%s2 + $0x88] sm:$0xff]
    %v655 = vld [vmem:[%s2 + $0x90] sm:$0xff]
    %v656 = vld [vmem:[%s2 + $0x98] sm:$0xff]
    %v657 = vld [vmem:[%s2 + $0xa0] sm:$0xff]
    %v658 = vld [vmem:[%s2 + $0xa8] sm:$0xff]
    %v659 = vld [vmem:[%s2 + $0xb0] sm:$0xff]
    %v660 = vld [vmem:[%s2 + $0xb8] sm:$0xff]
    %v661 = vld [vmem:[%s2 + $0xc0] sm:$0xff]
    %v662 = vld [vmem:[%s2 + $0xc8] sm:$0xff]
    %v663 = vld [vmem:[%s2 + $0xd0] sm:$0xff]
    %v664 = vld [vmem:[%s2 + $0xd8] sm:$0xff]
    %v665 = vld [vmem:[%s2 + $0xe0] sm:$0xff]
    %v666 = vld [vmem:[%s2 + $0xe8] sm:$0xff]
    %v667 = vld [vmem:[%s2 + $0xf0] sm:$0xff]
    %v668 = vld [vmem:[%s2 + $0xf8] sm:$0xff]
    %v669 = vld [vmem:[#allocation2] sm:$0xff]
    %v670 = vld [vmem:[#allocation2 + $0x8] sm:$0xff]
    %v671 = vld [vmem:[#allocation2 + $0x10] sm:$0xff]
    %v672 = vld [vmem:[#allocation2 + $0x18] sm:$0xff]
    %v673 = vld [vmem:[#allocation2 + $0x20] sm:$0xff]
    %v674 = vld [vmem:[#allocation2 + $0x28] sm:$0xff]
    %v675 = vld [vmem:[#allocation2 + $0x30] sm:$0xff]
    %v676 = vld [vmem:[#allocation2 + $0x38] sm:$0xff]
    %v677 = vld [vmem:[#allocation2 + $0x40] sm:$0xff]
    %v678 = vld [vmem:[#allocation2 + $0x48] sm:$0xff]
    %v679 = vld [vmem:[#allocation2 + $0x50] sm:$0xff]
    %v680 = vld [vmem:[#allocation2 + $0x58] sm:$0xff]
    %v681 = vld [vmem:[#allocation2 + $0x60] sm:$0xff]
    %v682 = vld [vmem:[#allocation2 + $0x68] sm:$0xff]
    %v683 = vld [vmem:[#allocation2 + $0x70] sm:$0xff]
    %v684 = vld [vmem:[#allocation2 + $0x78] sm:$0xff]
    %v685 = vld [vmem:[#allocation2 + $0x80] sm:$0xff]
    %v686 = vld [vmem:[#allocation2 + $0x88] sm:$0xff]
    %v687 = vld [vmem:[#allocation2 + $0x90] sm:$0xff]
    %v688 = vld [vmem:[#allocation2 + $0x98] sm:$0xff]
    %v689 = vld [vmem:[#allocation2 + $0xa0] sm:$0xff]
    %v690 = vld [vmem:[#allocation2 + $0xa8] sm:$0xff]
    %v691 = vld [vmem:[#allocation2 + $0xb0] sm:$0xff]
    %v692 = vld [vmem:[#allocation2 + $0xb8] sm:$0xff]
    %v693 = vld [vmem:[#allocation2 + $0xc0] sm:$0xff]
    %v694 = vld [vmem:[#allocation2 + $0xc8] sm:$0xff]
    %v695 = vld [vmem:[#allocation2 + $0xd0] sm:$0xff]
    %v696 = vld [vmem:[#allocation2 + $0xd8] sm:$0xff]
    %v697 = vld [vmem:[#allocation2 + $0xe0] sm:$0xff]
    %v698 = vld [vmem:[#allocation2 + $0xe8] sm:$0xff]
    %v699 = vld [vmem:[#allocation2 + $0xf0] sm:$0xff]
    %v700 = vld [vmem:[#allocation2 + $0xf8] sm:$0xff]
    %702 = vset.pattern.permute.xlu0 0
    %703 = vperm.xlu0 %702, %v637
    %v704 = vpop.permute.xlu0 %703
    %707 = vset.pattern.permute.xlu0 0
    %708 = vperm.xlu0 %707, %v638
    %v709 = vpop.permute.xlu0 %708
    %712 = vset.pattern.permute.xlu0 0
    %713 = vperm.xlu0 %712, %v639
    %v714 = vpop.permute.xlu0 %713
    %717 = vset.pattern.permute.xlu0 0
    %718 = vperm.xlu0 %717, %v640
    %v719 = vpop.permute.xlu0 %718
    %722 = vset.pattern.permute.xlu0 0
    %723 = vperm.xlu0 %722, %v641
    %v724 = vpop.permute.xlu0 %723
    %727 = vset.pattern.permute.xlu0 0
    %728 = vperm.xlu0 %727, %v642
    %v729 = vpop.permute.xlu0 %728
    %732 = vset.pattern.permute.xlu0 0
    %733 = vperm.xlu0 %732, %v643
    %v734 = vpop.permute.xlu0 %733
    %737 = vset.pattern.permute.xlu0 0
    %738 = vperm.xlu0 %737, %v644
    %v739 = vpop.permute.xlu0 %738
    %742 = vset.pattern.permute.xlu0 0
    %743 = vperm.xlu0 %742, %v645
    %v744 = vpop.permute.xlu0 %743
    %747 = vset.pattern.permute.xlu0 0
    %748 = vperm.xlu0 %747, %v646
    %v749 = vpop.permute.xlu0 %748
    %752 = vset.pattern.permute.xlu0 0
    %753 = vperm.xlu0 %752, %v647
    %v754 = vpop.permute.xlu0 %753
    %757 = vset.pattern.permute.xlu0 0
    %758 = vperm.xlu0 %757, %v648
    %v759 = vpop.permute.xlu0 %758
    %762 = vset.pattern.permute.xlu0 0
    %763 = vperm.xlu0 %762, %v649
    %v764 = vpop.permute.xlu0 %763
    %767 = vset.pattern.permute.xlu0 0
    %768 = vperm.xlu0 %767, %v650
    %v769 = vpop.permute.xlu0 %768
    %772 = vset.pattern.permute.xlu0 0
    %773 = vperm.xlu0 %772, %v651
    %v774 = vpop.permute.xlu0 %773
    %777 = vset.pattern.permute.xlu0 0
    %778 = vperm.xlu0 %777, %v652
    %v779 = vpop.permute.xlu0 %778
    %782 = vset.pattern.permute.xlu0 0
    %783 = vperm.xlu0 %782, %v653
    %v784 = vpop.permute.xlu0 %783
    %787 = vset.pattern.permute.xlu0 0
    %788 = vperm.xlu0 %787, %v654
    %v789 = vpop.permute.xlu0 %788
    %792 = vset.pattern.permute.xlu0 0
    %793 = vperm.xlu0 %792, %v655
    %v794 = vpop.permute.xlu0 %793
    %797 = vset.pattern.permute.xlu0 0
    %798 = vperm.xlu0 %797, %v656
    %v799 = vpop.permute.xlu0 %798
    %802 = vset.pattern.permute.xlu0 0
    %803 = vperm.xlu0 %802, %v657
    %v804 = vpop.permute.xlu0 %803
    %807 = vset.pattern.permute.xlu0 0
    %808 = vperm.xlu0 %807, %v658
    %v809 = vpop.permute.xlu0 %808
    %812 = vset.pattern.permute.xlu0 0
    %813 = vperm.xlu0 %812, %v659
    %v814 = vpop.permute.xlu0 %813
    %817 = vset.pattern.permute.xlu0 0
    %818 = vperm.xlu0 %817, %v660
    %v819 = vpop.permute.xlu0 %818
    %822 = vset.pattern.permute.xlu0 0
    %823 = vperm.xlu0 %822, %v661
    %v824 = vpop.permute.xlu0 %823
    %827 = vset.pattern.permute.xlu0 0
    %828 = vperm.xlu0 %827, %v662
    %v829 = vpop.permute.xlu0 %828
    %832 = vset.pattern.permute.xlu0 0
    %833 = vperm.xlu0 %832, %v663
    %v834 = vpop.permute.xlu0 %833
    %837 = vset.pattern.permute.xlu0 0
    %838 = vperm.xlu0 %837, %v664
    %v839 = vpop.permute.xlu0 %838
    %842 = vset.pattern.permute.xlu0 0
    %843 = vperm.xlu0 %842, %v665
    %v844 = vpop.permute.xlu0 %843
    %847 = vset.pattern.permute.xlu0 0
    %848 = vperm.xlu0 %847, %v666
    %v849 = vpop.permute.xlu0 %848
    %852 = vset.pattern.permute.xlu0 0
    %853 = vperm.xlu0 %852, %v667
    %v854 = vpop.permute.xlu0 %853
    %857 = vset.pattern.permute.xlu0 0
    %858 = vperm.xlu0 %857, %v668
    %v859 = vpop.permute.xlu0 %858
    %v861 = vmul.f32 %v704, %v669
    %v862 = vmul.f32 %v709, %v670
    %v863 = vmul.f32 %v714, %v671
    %v864 = vmul.f32 %v719, %v672
    %v865 = vmul.f32 %v724, %v673
    %v866 = vmul.f32 %v729, %v674
    %v867 = vmul.f32 %v734, %v675
    %v868 = vmul.f32 %v739, %v676
    %v869 = vmul.f32 %v744, %v677
    %v870 = vmul.f32 %v749, %v678
    %v871 = vmul.f32 %v754, %v679
    %v872 = vmul.f32 %v759, %v680
    %v873 = vmul.f32 %v764, %v681
    %v874 = vmul.f32 %v769, %v682
    %v875 = vmul.f32 %v774, %v683
    %v876 = vmul.f32 %v779, %v684
    %v877 = vmul.f32 %v784, %v685
    %v878 = vmul.f32 %v789, %v686
    %v879 = vmul.f32 %v794, %v687
    %v880 = vmul.f32 %v799, %v688
    %v881 = vmul.f32 %v804, %v689
    %v882 = vmul.f32 %v809, %v690
    %v883 = vmul.f32 %v814, %v691
    %v884 = vmul.f32 %v819, %v692
    %v885 = vmul.f32 %v824, %v693
    %v886 = vmul.f32 %v829, %v694
    %v887 = vmul.f32 %v834, %v695
    %v888 = vmul.f32 %v839, %v696
    %v889 = vmul.f32 %v844, %v697
    %v890 = vmul.f32 %v849, %v698
    %v891 = vmul.f32 %v854, %v699
    %v892 = vmul.f32 %v859, %v700
    %v893 = vld [vmem:[%s3] sm:$0x1]
    %v895 = vperm.slane %v893, 0
    %v897 = vadd.f32 %v861, %v895
    %v898 = vadd.f32 %v862, %v895
    %v899 = vadd.f32 %v863, %v895
    %v900 = vadd.f32 %v864, %v895
    %v901 = vadd.f32 %v865, %v895
    %v902 = vadd.f32 %v866, %v895
    %v903 = vadd.f32 %v867, %v895
    %v904 = vadd.f32 %v868, %v895
    %v905 = vadd.f32 %v869, %v895
    %v906 = vadd.f32 %v870, %v895
    %v907 = vadd.f32 %v871, %v895
    %v908 = vadd.f32 %v872, %v895
    %v909 = vadd.f32 %v873, %v895
    %v910 = vadd.f32 %v874, %v895
    %v911 = vadd.f32 %v875, %v895
    %v912 = vadd.f32 %v876, %v895
    %v913 = vadd.f32 %v877, %v895
    %v914 = vadd.f32 %v878, %v895
    %v915 = vadd.f32 %v879, %v895
    %v916 = vadd.f32 %v880, %v895
    %v917 = vadd.f32 %v881, %v895
    %v918 = vadd.f32 %v882, %v895
    %v919 = vadd.f32 %v883, %v895
    %v920 = vadd.f32 %v884, %v895
    %v921 = vadd.f32 %v885, %v895
    %v922 = vadd.f32 %v886, %v895
    %v923 = vadd.f32 %v887, %v895
    %v924 = vadd.f32 %v888, %v895
    %v925 = vadd.f32 %v889, %v895
    %v926 = vadd.f32 %v890, %v895
    %v927 = vadd.f32 %v891, %v895
    %v928 = vadd.f32 %v892, %v895
    %v929 = vmax.f32 %v897, 0.0
    %v930 = vmax.f32 %v898, 0.0
    %v931 = vmax.f32 %v899, 0.0
    %v932 = vmax.f32 %v900, 0.0
    %v933 = vmax.f32 %v901, 0.0
    %v934 = vmax.f32 %v902, 0.0
    %v935 = vmax.f32 %v903, 0.0
    %v936 = vmax.f32 %v904, 0.0
    %v937 = vmax.f32 %v905, 0.0
    %v938 = vmax.f32 %v906, 0.0
    %v939 = vmax.f32 %v907, 0.0
    %v940 = vmax.f32 %v908, 0.0
    %v941 = vmax.f32 %v909, 0.0
    %v942 = vmax.f32 %v910, 0.0
    %v943 = vmax.f32 %v911, 0.0
    %v944 = vmax.f32 %v912, 0.0
    %v945 = vmax.f32 %v913, 0.0
    %v946 = vmax.f32 %v914, 0.0
    %v947 = vmax.f32 %v915, 0.0
    %v948 = vmax.f32 %v916, 0.0
    %v949 = vmax.f32 %v917, 0.0
    %v950 = vmax.f32 %v918, 0.0
    %v951 = vmax.f32 %v919, 0.0
    %v952 = vmax.f32 %v920, 0.0
    %v953 = vmax.f32 %v921, 0.0
    %v954 = vmax.f32 %v922, 0.0
    %v955 = vmax.f32 %v923, 0.0
    %v956 = vmax.f32 %v924, 0.0
    %v957 = vmax.f32 %v925, 0.0
    %v958 = vmax.f32 %v926, 0.0
    %v959 = vmax.f32 %v927, 0.0
    %v960 = vmax.f32 %v928, 0.0
    %v961 = vpack.c.bf16 %v930, %v929
    %v962 = vpack.c.bf16 %v932, %v931
    %v963 = vpack.c.bf16 %v934, %v933
    %v964 = vpack.c.bf16 %v936, %v935
    %v965 = vpack.c.bf16 %v938, %v937
    %v966 = vpack.c.bf16 %v940, %v939
    %v967 = vpack.c.bf16 %v942, %v941
    %v968 = vpack.c.bf16 %v944, %v943
    %v969 = vpack.c.bf16 %v946, %v945
    %v970 = vpack.c.bf16 %v948, %v947
    %v971 = vpack.c.bf16 %v950, %v949
    %v972 = vpack.c.bf16 %v952, %v951
    %v973 = vpack.c.bf16 %v954, %v953
    %v974 = vpack.c.bf16 %v956, %v955
    %v975 = vpack.c.bf16 %v958, %v957
    %v976 = vpack.c.bf16 %v960, %v959
    %v977 = vld [vmem:[%s4] sm:$0xf]
    %v978 = vld [vmem:[%s4 + $0x4] sm:$0xf]
    %v979 = vld [vmem:[%s4 + $0x8] sm:$0xf]
    %v980 = vld [vmem:[%s4 + $0xc] sm:$0xf]
    %v981 = vld [vmem:[%s4 + $0x10] sm:$0xf]
    %v982 = vld [vmem:[%s4 + $0x14] sm:$0xf]
    %v983 = vld [vmem:[%s4 + $0x18] sm:$0xf]
    %v984 = vld [vmem:[%s4 + $0x1c] sm:$0xf]
    %v985 = vld [vmem:[%s4 + $0x20] sm:$0xf]
    %v986 = vld [vmem:[%s4 + $0x24] sm:$0xf]
    %v987 = vld [vmem:[%s4 + $0x28] sm:$0xf]
    %v988 = vld [vmem:[%s4 + $0x2c] sm:$0xf]
    %v989 = vld [vmem:[%s4 + $0x30] sm:$0xf]
    %v990 = vld [vmem:[%s4 + $0x34] sm:$0xf]
    %v991 = vld [vmem:[%s4 + $0x38] sm:$0xf]
    %v992 = vld [vmem:[%s4 + $0x3c] sm:$0xf]
    %v1009 = vunpack.c.l.b16 %v977
    %v1010 = vunpack.c.l.b16 %v978
    %v1011 = vunpack.c.l.b16 %v979
    %v1012 = vunpack.c.l.b16 %v980
    %v1013 = vunpack.c.l.b16 %v981
    %v1014 = vunpack.c.l.b16 %v982
    %v1015 = vunpack.c.l.b16 %v983
    %v1016 = vunpack.c.l.b16 %v984
    %v1017 = vunpack.c.l.b16 %v985
    %v1018 = vunpack.c.l.b16 %v986
    %v1019 = vunpack.c.l.b16 %v987
    %v1020 = vunpack.c.l.b16 %v988
    %v1021 = vunpack.c.l.b16 %v989
    %v1022 = vunpack.c.l.b16 %v990
    %v1023 = vunpack.c.l.b16 %v991
    %v1024 = vunpack.c.l.b16 %v992
    %v1025 = vpack.c.b16 %v1010, %v1009
    %v1026 = vpack.c.b16 %v1012, %v1011
    %v1027 = vpack.c.b16 %v1014, %v1013
    %v1028 = vpack.c.b16 %v1016, %v1015
    %v1029 = vpack.c.b16 %v1018, %v1017
    %v1030 = vpack.c.b16 %v1020, %v1019
    %v1031 = vpack.c.b16 %v1022, %v1021
    %v1032 = vpack.c.b16 %v1024, %v1023
    %1041 = vmatpush.bf16.msra.mxu0 %v1032
    %1042 = vmatpush.bf16.msra.mxu0 %v1031
    %1043 = vmatpush.bf16.msra.mxu0 %v1030
    %1044 = vmatpush.bf16.msra.mxu0 %v1029
    %1045 = vmatpush.bf16.msra.mxu0 %v1028
    %1046 = vmatpush.bf16.msra.mxu0 %v1027
    %1047 = vmatpush.bf16.msra.mxu0 %v1026
    %1048 = vmatpush.bf16.msra.mxu0 %v1025
    %1049 = vmatmul.bf16.gmra.mxu0 %v961
    %v1050 = vpop.f32.mrf.mxu0
    %v1051 = vadd.f32 0.0, %v1050
    %v1052 = vpop.f32.mrf.mxu0
    %v1053 = vadd.f32 0.0, %v1052
    %1054 = vmatmul.bf16.gmra.mxu0 %v962
    %v1055 = vpop.f32.mrf.mxu0
    %v1056 = vadd.f32 0.0, %v1055
    %v1057 = vpop.f32.mrf.mxu0
    %v1058 = vadd.f32 0.0, %v1057
    %1059 = vmatmul.bf16.gmra.mxu0 %v963
    %v1060 = vpop.f32.mrf.mxu0
    %v1061 = vadd.f32 0.0, %v1060
    %v1062 = vpop.f32.mrf.mxu0
    %v1063 = vadd.f32 0.0, %v1062
    %1064 = vmatmul.bf16.gmra.mxu0 %v964
    %v1065 = vpop.f32.mrf.mxu0
    %v1066 = vadd.f32 0.0, %v1065
    %v1067 = vpop.f32.mrf.mxu0
    %v1068 = vadd.f32 0.0, %v1067
    %1069 = vmatmul.bf16.gmra.mxu0 %v965
    %v1070 = vpop.f32.mrf.mxu0
    %v1071 = vadd.f32 0.0, %v1070
    %v1072 = vpop.f32.mrf.mxu0
    %v1073 = vadd.f32 0.0, %v1072
    %1074 = vmatmul.bf16.gmra.mxu0 %v966
    %v1075 = vpop.f32.mrf.mxu0
    %v1076 = vadd.f32 0.0, %v1075
    %v1077 = vpop.f32.mrf.mxu0
    %v1078 = vadd.f32 0.0, %v1077
    %1079 = vmatmul.bf16.gmra.mxu0 %v967
    %v1080 = vpop.f32.mrf.mxu0
    %v1081 = vadd.f32 0.0, %v1080
    %v1082 = vpop.f32.mrf.mxu0
    %v1083 = vadd.f32 0.0, %v1082
    %1084 = vmatmul.bf16.gmra.mxu0 %v968
    %v1085 = vpop.f32.mrf.mxu0
    %v1086 = vadd.f32 0.0, %v1085
    %v1087 = vpop.f32.mrf.mxu0
    %v1088 = vadd.f32 0.0, %v1087
    %1089 = vmatmul.bf16.gmra.mxu0 %v969
    %v1090 = vpop.f32.mrf.mxu0
    %v1091 = vadd.f32 0.0, %v1090
    %v1092 = vpop.f32.mrf.mxu0
    %v1093 = vadd.f32 0.0, %v1092
    %1094 = vmatmul.bf16.gmra.mxu0 %v970
    %v1095 = vpop.f32.mrf.mxu0
    %v1096 = vadd.f32 0.0, %v1095
    %v1097 = vpop.f32.mrf.mxu0
    %v1098 = vadd.f32 0.0, %v1097
    %1099 = vmatmul.bf16.gmra.mxu0 %v971
    %v1100 = vpop.f32.mrf.mxu0
    %v1101 = vadd.f32 0.0, %v1100
    %v1102 = vpop.f32.mrf.mxu0
    %v1103 = vadd.f32 0.0, %v1102
    %1104 = vmatmul.bf16.gmra.mxu0 %v972
    %v1105 = vpop.f32.mrf.mxu0
    %v1106 = vadd.f32 0.0, %v1105
    %v1107 = vpop.f32.mrf.mxu0
    %v1108 = vadd.f32 0.0, %v1107
    %1109 = vmatmul.bf16.gmra.mxu0 %v973
    %v1110 = vpop.f32.mrf.mxu0
    %v1111 = vadd.f32 0.0, %v1110
    %v1112 = vpop.f32.mrf.mxu0
    %v1113 = vadd.f32 0.0, %v1112
    %1114 = vmatmul.bf16.gmra.mxu0 %v974
    %v1115 = vpop.f32.mrf.mxu0
    %v1116 = vadd.f32 0.0, %v1115
    %v1117 = vpop.f32.mrf.mxu0
    %v1118 = vadd.f32 0.0, %v1117
    %1119 = vmatmul.bf16.gmra.mxu0 %v975
    %v1120 = vpop.f32.mrf.mxu0
    %v1121 = vadd.f32 0.0, %v1120
    %v1122 = vpop.f32.mrf.mxu0
    %v1123 = vadd.f32 0.0, %v1122
    %1124 = vmatmul.bf16.gmra.mxu0 %v976
    %v1125 = vpop.f32.mrf.mxu0
    %v1126 = vadd.f32 0.0, %v1125
    %v1127 = vpop.f32.mrf.mxu0
    %v1128 = vadd.f32 0.0, %v1127
    %1129 = vdwg.mxu0
    %v1130 = vmul.f32 %v704, %v1051
    %v1131 = vmul.f32 %v709, %v1053
    %v1132 = vmul.f32 %v714, %v1056
    %v1133 = vmul.f32 %v719, %v1058
    %v1134 = vmul.f32 %v724, %v1061
    %v1135 = vmul.f32 %v729, %v1063
    %v1136 = vmul.f32 %v734, %v1066
    %v1137 = vmul.f32 %v739, %v1068
    %v1138 = vmul.f32 %v744, %v1071
    %v1139 = vmul.f32 %v749, %v1073
    %v1140 = vmul.f32 %v754, %v1076
    %v1141 = vmul.f32 %v759, %v1078
    %v1142 = vmul.f32 %v764, %v1081
    %v1143 = vmul.f32 %v769, %v1083
    %v1144 = vmul.f32 %v774, %v1086
    %v1145 = vmul.f32 %v779, %v1088
    %v1146 = vmul.f32 %v784, %v1091
    %v1147 = vmul.f32 %v789, %v1093
    %v1148 = vmul.f32 %v794, %v1096
    %v1149 = vmul.f32 %v799, %v1098
    %v1150 = vmul.f32 %v804, %v1101
    %v1151 = vmul.f32 %v809, %v1103
    %v1152 = vmul.f32 %v814, %v1106
    %v1153 = vmul.f32 %v819, %v1108
    %v1154 = vmul.f32 %v824, %v1111
    %v1155 = vmul.f32 %v829, %v1113
    %v1156 = vmul.f32 %v834, %v1116
    %v1157 = vmul.f32 %v839, %v1118
    %v1158 = vmul.f32 %v844, %v1121
    %v1159 = vmul.f32 %v849, %v1123
    %v1160 = vmul.f32 %v854, %v1126
    %v1161 = vmul.f32 %v859, %v1128
    %v1162 = vpack.c.bf16 %v1130, %v1130
    %v1163 = vpack.c.bf16 %v1131, %v1131
    %v1164 = vpack.c.bf16 %v1132, %v1132
    %v1165 = vpack.c.bf16 %v1133, %v1133
    %v1166 = vpack.c.bf16 %v1134, %v1134
    %v1167 = vpack.c.bf16 %v1135, %v1135
    %v1168 = vpack.c.bf16 %v1136, %v1136
    %v1169 = vpack.c.bf16 %v1137, %v1137
    %v1170 = vpack.c.bf16 %v1138, %v1138
    %v1171 = vpack.c.bf16 %v1139, %v1139
    %v1172 = vpack.c.bf16 %v1140, %v1140
    %v1173 = vpack.c.bf16 %v1141, %v1141
    %v1174 = vpack.c.bf16 %v1142, %v1142
    %v1175 = vpack.c.bf16 %v1143, %v1143
    %v1176 = vpack.c.bf16 %v1144, %v1144
    %v1177 = vpack.c.bf16 %v1145, %v1145
    %v1178 = vpack.c.bf16 %v1146, %v1146
    %v1179 = vpack.c.bf16 %v1147, %v1147
    %v1180 = vpack.c.bf16 %v1148, %v1148
    %v1181 = vpack.c.bf16 %v1149, %v1149
    %v1182 = vpack.c.bf16 %v1150, %v1150
    %v1183 = vpack.c.bf16 %v1151, %v1151
    %v1184 = vpack.c.bf16 %v1152, %v1152
    %v1185 = vpack.c.bf16 %v1153, %v1153
    %v1186 = vpack.c.bf16 %v1154, %v1154
    %v1187 = vpack.c.bf16 %v1155, %v1155
    %v1188 = vpack.c.bf16 %v1156, %v1156
    %v1189 = vpack.c.bf16 %v1157, %v1157
    %v1190 = vpack.c.bf16 %v1158, %v1158
    %v1191 = vpack.c.bf16 %v1159, %v1159
    %v1192 = vpack.c.bf16 %v1160, %v1160
    %v1193 = vpack.c.bf16 %v1161, %v1161
    %1194 = vst [vmem:[%s5] sm:$0xf] %v1162
    %1195 = vst [vmem:[%s5 + $0x4] sm:$0xf] %v1163
    %1196 = vst [vmem:[%s5 + $0x8] sm:$0xf] %v1164
    %1197 = vst [vmem:[%s5 + $0xc] sm:$0xf] %v1165
    %1198 = vst [vmem:[%s5 + $0x10] sm:$0xf] %v1166
    %1199 = vst [vmem:[%s5 + $0x14] sm:$0xf] %v1167
    %1200 = vst [vmem:[%s5 + $0x18] sm:$0xf] %v1168
    %1201 = vst [vmem:[%s5 + $0x1c] sm:$0xf] %v1169
    %1202 = vst [vmem:[%s5 + $0x20] sm:$0xf] %v1170
    %1203 = vst [vmem:[%s5 + $0x24] sm:$0xf] %v1171
    %1204 = vst [vmem:[%s5 + $0x28] sm:$0xf] %v1172
    %1205 = vst [vmem:[%s5 + $0x2c] sm:$0xf] %v1173
    %1206 = vst [vmem:[%s5 + $0x30] sm:$0xf] %v1174
    %1207 = vst [vmem:[%s5 + $0x34] sm:$0xf] %v1175
    %1208 = vst [vmem:[%s5 + $0x38] sm:$0xf] %v1176
    %1209 = vst [vmem:[%s5 + $0x3c] sm:$0xf] %v1177
    %1210 = vst [vmem:[%s5 + $0x40] sm:$0xf] %v1178
    %1211 = vst [vmem:[%s5 + $0x44] sm:$0xf] %v1179
    %1212 = vst [vmem:[%s5 + $0x48] sm:$0xf] %v1180
    %1213 = vst [vmem:[%s5 + $0x4c] sm:$0xf] %v1181
    %1214 = vst [vmem:[%s5 + $0x50] sm:$0xf] %v1182
    %1215 = vst [vmem:[%s5 + $0x54] sm:$0xf] %v1183
    %1216 = vst [vmem:[%s5 + $0x58] sm:$0xf] %v1184
    %1217 = vst [vmem:[%s5 + $0x5c] sm:$0xf] %v1185
    %1218 = vst [vmem:[%s5 + $0x60] sm:$0xf] %v1186
    %1219 = vst [vmem:[%s5 + $0x64] sm:$0xf] %v1187
    %1220 = vst [vmem:[%s5 + $0x68] sm:$0xf] %v1188
    %1221 = vst [vmem:[%s5 + $0x6c] sm:$0xf] %v1189
    %1222 = vst [vmem:[%s5 + $0x70] sm:$0xf] %v1190
    %1223 = vst [vmem:[%s5 + $0x74] sm:$0xf] %v1191
    %1224 = vst [vmem:[%s5 + $0x78] sm:$0xf] %v1192
    %1225 = vst [vmem:[%s5 + $0x7c] sm:$0xf] %v1193
  $region29: #{gcn_forward.4} parent=0 // pred_fallthru
    _
  // Predicated region
  $region30: #{gcn_forward.4} parent=0 // pred_check
    _
  $region31: #{gcn_forward.4} parent=0 // pred_check_branch
    %1227 = sbr.rel (0) target = $region33
  $region32: #{gcn_forward.4} parent=0 // pred_region
    _
  $region33: #{gcn_forward.4} parent=0 // pred_fallthru
    _
  // Predicated region
  $region34: #{gcn_forward.4} parent=0 // pred_check
    _
  $region35: #{gcn_forward.4} parent=0 // pred_check_branch
    %1229 = sbr.rel (0) target = $region37
  $region36: #{gcn_forward.4} parent=0 // pred_region
    _
  $region37: #{gcn_forward.4} parent=0 // pred_fallthru
    _

</llo_original>
